<compile_context>
chip_gen: v5e
topology: v5e:2x2
jax: 0.10.0
libtpu: 0.0.40
codegen_flags: <defaults>
</compile_context>

<pallas_src>
import jax
import jax.numpy as jnp
from jax import lax
from jax.experimental import pallas as pl
from jax.experimental.pallas import tpu as pltpu

# ---------------- model dims (small, consistent with the module) ----------------
VOCAB = 32
EMB = 16      # embedding_dim
HID = 32      # hidden_dim
BATCH = 2     # user-facing batch (padded to B_TILE inside the wrapper)
SEQ = 8
B_TILE = 8    # sequences per grid step (f32 sublane multiple; raise to 128+ for throughput)


def lstm_fc_kernel(ids_ref,      # (1, T*B, 1) int32  time-major token ids for this batch tile
                   proj0_ref,    # (VOCAB, 4H) f32    emb @ W_ih0^T + (b_ih0+b_hh0), gate order i,f,o,g
                   whh0_ref,     # (H, 4H)     bf16   W_hh0^T  (i,f,o,g)
                   whh1_ref,     # (H, 4H)     bf16   W_hh1^T  (i,f,o,g)
                   wih1_ref,     # (H, 4H)     bf16   W_ih1^T  (i,f,o,g)
                   b1_ref,       # (1, 4H)     f32    b_ih1 + b_hh1 (i,f,o,g)
                   wfc_ref,      # (1, H)      f32    fc weight row
                   bfc_ref,      # (1, 1)      f32    fc bias
                   out_ref):     # (1, 1, B)   f32    sigmoid(fc(h1[T-1])), batch on lanes
    V, G4 = proj0_ref.shape
    H = G4 // 4
    B = out_ref.shape[2]
    TB = ids_ref.shape[1]
    T = TB // B

    # ---- hoisted pre-pass (off the serial chain): fused embedding gather +
    #      layer-0 input projection (+ b0) as ONE one-hot matmul --------------------
    ids = ids_ref[0]                                                     # (T*B, 1) int32
    onehot = (ids == lax.broadcasted_iota(jnp.int32, (TB, V), 1)).astype(jnp.float32)
    g0x_all = jnp.dot(onehot, proj0_ref[...],
                      preferred_element_type=jnp.float32)                # (T*B, 4H) f32

    whh0 = whh0_ref[...]                                                 # bf16
    whh1 = whh1_ref[...]                                                 # bf16
    wih1 = wih1_ref[...]                                                 # bf16
    b1 = jnp.broadcast_to(b1_ref[...], (B, G4))                          # hoisted broadcast

    def cell(gates, c_prev):
        # Gate columns are pre-permuted to (i, f, o, g): one sigmoid over 3H lanes,
        # one tanh over H lanes (instead of full-width sigmoid + tanh over 4H).
        sg = jax.nn.sigmoid(gates[:, :3 * H])
        g = jnp.tanh(gates[:, 3 * H:])
        i = sg[:, 0 * H:1 * H]
        f = sg[:, 1 * H:2 * H]
        o = sg[:, 2 * H:3 * H]
        c_new = f * c_prev + i * g
        h_new = o * jnp.tanh(c_new)
        return h_new, c_new

    h0 = jnp.zeros((B, H), jnp.float32)
    c0 = jnp.zeros((B, H), jnp.float32)
    h1 = jnp.zeros((B, H), jnp.float32)
    c1 = jnp.zeros((B, H), jnp.float32)

    # Fully unrolled recurrence (T static & small).  Separate W_hh dots keep layer-0(t+1)
    # independent of layer-1(t) so the scheduler can overlap them (wavefront skew).
    for t in range(T):
        gates0 = g0x_all[t * B:(t + 1) * B, :] + jnp.dot(                # b0 folded into proj0
            h0.astype(jnp.bfloat16), whh0, preferred_element_type=jnp.float32)
        h0, c0 = cell(gates0, c0)
        gates1 = (jnp.dot(h0.astype(jnp.bfloat16), wih1,
                          preferred_element_type=jnp.float32)
                  + jnp.dot(h1.astype(jnp.bfloat16), whh1,
                            preferred_element_type=jnp.float32)
                  + b1)
        h1, c1 = cell(gates1, c1)

    # Final Linear + Sigmoid, emitted lane-dense (batch on the lane axis).
    logits = jnp.dot(wfc_ref[...], h1.T,                                 # (1, B)
                     preferred_element_type=jnp.float32) + bfc_ref[...]
    out_ref[...] = jax.nn.sigmoid(logits).reshape(1, 1, B)


def make_params(key):
    ks = jax.random.split(key, 10)
    s = 0.1
    emb_tbl = s * jax.random.normal(ks[0], (VOCAB, EMB), jnp.float32)
    emb_tbl = emb_tbl.at[0].set(0.0)  # padding_idx=0 -> zero row

    # PyTorch stores W_ih as (4H, in); keep that convention, transpose in prepare_params.
    w_ih0 = s * jax.random.normal(ks[1], (4 * HID, EMB), jnp.float32)
    w_hh0 = s * jax.random.normal(ks[2], (4 * HID, HID), jnp.float32)
    b_ih0 = s * jax.random.normal(ks[3], (4 * HID,), jnp.float32)
    b_hh0 = s * jax.random.normal(ks[4], (4 * HID,), jnp.float32)

    w_ih1 = s * jax.random.normal(ks[5], (4 * HID, HID), jnp.float32)
    w_hh1 = s * jax.random.normal(ks[6], (4 * HID, HID), jnp.float32)
    b_ih1 = s * jax.random.normal(ks[7], (4 * HID,), jnp.float32)
    b_hh1 = s * jax.random.normal(ks[8], (4 * HID,), jnp.float32)

    w_fc = s * jax.random.normal(ks[9], (1, HID), jnp.float32)
    b_fc = jnp.zeros((1,), jnp.float32)

    return dict(emb=emb_tbl,
                w_ih0=w_ih0, w_hh0=w_hh0, b_ih0=b_ih0, b_hh0=b_hh0,
                w_ih1=w_ih1, w_hh1=w_hh1, b_ih1=b_ih1, b_hh1=b_hh1,
                w_fc=w_fc, b_fc=b_fc)


def _permute_gates(w4h):
    """Reorder gate columns from torch (i, f, g, o) to (i, f, o, g)."""
    H = w4h.shape[-1] // 4
    i = w4h[..., 0 * H:1 * H]
    f = w4h[..., 1 * H:2 * H]
    g = w4h[..., 2 * H:3 * H]
    o = w4h[..., 3 * H:4 * H]
    return jnp.concatenate([i, f, o, g], axis=-1)


def prepare_params(params):
    """One-time weight preparation (outside the per-call hot path)."""
    wih0_t = params["w_ih0"].T                                     # (E, 4H)
    b0 = (params["b_ih0"] + params["b_hh0"]).reshape(1, 4 * HID)
    # Fuse the embedding lookup with the layer-0 input projection and fold b0 in.
    # (the one-hot gather picks exactly one row, so the fold is exact.)
    proj0 = _permute_gates(params["emb"] @ wih0_t + b0)            # (VOCAB, 4H) f32

    # Recurrent / layer-1 input weights in bf16 (fewer MXU passes on the serial chain);
    # accumulation stays f32 via preferred_element_type.
    whh0_t = _permute_gates(params["w_hh0"].T).astype(jnp.bfloat16)   # (H, 4H)
    whh1_t = _permute_gates(params["w_hh1"].T).astype(jnp.bfloat16)   # (H, 4H)
    wih1_t = _permute_gates(params["w_ih1"].T).astype(jnp.bfloat16)   # (H, 4H)
    b1 = _permute_gates((params["b_ih1"] + params["b_hh1"]).reshape(1, 4 * HID))

    wfc = params["w_fc"].reshape(1, HID)
    bfc = params["b_fc"].reshape(1, 1)
    return dict(proj0=proj0, whh0_t=whh0_t, whh1_t=whh1_t, wih1_t=wih1_t,
                b1=b1, wfc=wfc, bfc=bfc)


@jax.jit
def password_rnn_forward(tokens, prep):
    B, T = tokens.shape
    # Pad the batch to a multiple of B_TILE (padding rows use token 0 and are discarded).
    B_pad = ((B + B_TILE - 1) // B_TILE) * B_TILE
    num_tiles = B_pad // B_TILE
    tokens_p = jnp.pad(tokens.astype(jnp.int32), ((0, B_pad - B), (0, 0)))

    # Time-major ids per batch tile: row t*B_TILE + b holds tokens[tile*B_TILE + b, t].
    ids = (tokens_p.reshape(num_tiles, B_TILE, T)
           .transpose(0, 2, 1)
           .reshape(num_tiles, T * B_TILE, 1))

    full2d = lambda i: (0, 0)
    out = pl.pallas_call(
        lstm_fc_kernel,
        out_shape=jax.ShapeDtypeStruct((num_tiles, 1, B_TILE), jnp.float32),
        grid=(num_tiles,),
        in_specs=[
            pl.BlockSpec((1, T * B_TILE, 1), lambda i: (i, 0, 0)),
            pl.BlockSpec(prep["proj0"].shape, full2d),
            pl.BlockSpec(prep["whh0_t"].shape, full2d),
            pl.BlockSpec(prep["whh1_t"].shape, full2d),
            pl.BlockSpec(prep["wih1_t"].shape, full2d),
            pl.BlockSpec(prep["b1"].shape, full2d),
            pl.BlockSpec(prep["wfc"].shape, full2d),
            pl.BlockSpec(prep["bfc"].shape, full2d),
        ],
        out_specs=pl.BlockSpec((1, 1, B_TILE), lambda i: (i, 0, 0)),
        compiler_params=pltpu.CompilerParams(
            dimension_semantics=("parallel",),        # batch tiles across TCs on v7x
            vmem_limit_bytes=32 * 1024 * 1024,        # re-derive if B_TILE grows (v7x: 64 MiB VMEM)
        ),
    )(ids, prep["proj0"], prep["whh0_t"], prep["whh1_t"], prep["wih1_t"],
      prep["b1"], prep["wfc"], prep["bfc"])

    return out.reshape(B_pad)[:B].reshape(B, 1)


def reference_forward(tokens, params):
    """Pure-JAX reference mirroring torch semantics (for a sanity check)."""
    embedded = params["emb"][tokens]                    # (B, T, E)

    def cell(x, h, c, w_ih, w_hh, b_ih, b_hh):
        gates = x @ w_ih.T + b_ih + h @ w_hh.T + b_hh
        i, f, g, o = jnp.split(gates, 4, axis=-1)
        c_new = jax.nn.sigmoid(f) * c + jax.nn.sigmoid(i) * jnp.tanh(g)
        h_new = jax.nn.sigmoid(o) * jnp.tanh(c_new)
        return h_new, c_new

    B = tokens.shape[0]
    h0 = c0 = h1 = c1 = jnp.zeros((B, HID), jnp.float32)
    for t in range(tokens.shape[1]):
        x_t = embedded[:, t, :]
        h0, c0 = cell(x_t, h0, c0, params["w_ih0"], params["w_hh0"],
                      params["b_ih0"], params["b_hh0"])
        h1, c1 = cell(h0, h1, c1, params["w_ih1"], params["w_hh1"],
                      params["b_ih1"], params["b_hh1"])
    logits = h1 @ params["w_fc"].T + params["b_fc"]
    return jax.nn.sigmoid(logits)


if __name__ == "__main__":
    key = jax.random.PRNGKey(0)
    pkey, xkey = jax.random.split(key)
    params = make_params(pkey)
    prep = prepare_params(params)

    # Deterministic token ids in [0, VOCAB); include some 0s (padding_idx).
    tokens = jax.random.randint(xkey, (BATCH, SEQ), 0, VOCAB, dtype=jnp.int32)
    tokens = tokens.at[:, -2:].set(0)   # trailing padding (runs through the LSTM, like nn.LSTM on a padded tensor)

    out = password_rnn_forward(tokens, prep)
    out = jax.block_until_ready(out)

    ref = reference_forward(tokens, params)
    assert out.shape == (BATCH, 1)
    # Tolerance loosened for the bf16 recurrent weights (f32 accumulation); observed error << 1e-2.
    assert jnp.allclose(out, ref, atol=1e-2, rtol=1e-2), (out, ref)

    print("KERNEL_OK")
</pallas_src>

<mosaic_0001>
module attributes {stable_mosaic.version = 11 : i64} {
  func.func @lstm_fc_kernel(%arg0: i32, %arg1: memref<1x64x1xi32, #tpu.memory_space<vmem>>, %arg2: memref<32x128xf32, #tpu.memory_space<vmem>>, %arg3: memref<32x128xbf16, #tpu.memory_space<vmem>>, %arg4: memref<32x128xbf16, #tpu.memory_space<vmem>>, %arg5: memref<32x128xbf16, #tpu.memory_space<vmem>>, %arg6: memref<1x128xf32, #tpu.memory_space<vmem>>, %arg7: memref<1x32xf32, #tpu.memory_space<vmem>>, %arg8: memref<1x1xf32, #tpu.memory_space<vmem>>, %arg9: memref<1x1x8xf32, #tpu.memory_space<vmem>>) attributes {dimension_semantics = [#tpu.dimension_semantics<parallel>], iteration_bounds = array<i64: 1>, scalar_prefetch = 0 : i64, scratch_operands = 0 : i64, tpu.core_type = #tpu.core_type<tc>, window_params = [{transform_indices = @transform_0, window_bounds = array<i64: 1, 64, 1>}, {pipeline_mode = #tpu.pipeline_mode<synchronous>, transform_indices = @transform_1, window_bounds = array<i64: 32, 128>}, {pipeline_mode = #tpu.pipeline_mode<synchronous>, transform_indices = @transform_2, window_bounds = array<i64: 32, 128>}, {pipeline_mode = #tpu.pipeline_mode<synchronous>, transform_indices = @transform_3, window_bounds = array<i64: 32, 128>}, {pipeline_mode = #tpu.pipeline_mode<synchronous>, transform_indices = @transform_4, window_bounds = array<i64: 32, 128>}, {pipeline_mode = #tpu.pipeline_mode<synchronous>, transform_indices = @transform_5, window_bounds = array<i64: 1, 128>}, {pipeline_mode = #tpu.pipeline_mode<synchronous>, transform_indices = @transform_6, window_bounds = array<i64: 1, 32>}, {pipeline_mode = #tpu.pipeline_mode<synchronous>, transform_indices = @transform_7, window_bounds = array<i64: 1, 1>}, {transform_indices = @transform_8, window_bounds = array<i64: 1, 1, 8>}]} {
    %c0 = arith.constant 0 : index
    %c0_0 = arith.constant 0 : index
    %c0_1 = arith.constant 0 : index
    %0 = vector.load %arg1[%c0, %c0_0, %c0_1] : memref<1x64x1xi32, #tpu.memory_space<vmem>>, vector<1x64x1xi32>
    %1 = vector.shape_cast %0 : vector<1x64x1xi32> to vector<64x1xi32>
    %2 = tpu.iota {dimensions = array<i32: 1>} : vector<64x32xi32>
    %3 = vector.broadcast %1 : vector<64x1xi32> to vector<64x32xi32>
    %4 = arith.cmpi eq, %3, %2 : vector<64x32xi32>
    %5 = arith.extui %4 : vector<64x32xi1> to vector<64x32xi32>
    %6 = arith.sitofp %5 : vector<64x32xi32> to vector<64x32xf32>
    %c0_2 = arith.constant 0 : index
    %c0_3 = arith.constant 0 : index
    %7 = vector.load %arg2[%c0_2, %c0_3] : memref<32x128xf32, #tpu.memory_space<vmem>>, vector<32x128xf32>
    %cst = arith.constant dense<0.000000e+00> : vector<64x128xf32>
    %8 = tpu.matmul %6, %7, %cst {dimension_numbers = #tpu.dot_dimension_numbers<[1], [0], [0], [1], [0, 0, 1, 1], [], []>} : vector<64x32xf32>, vector<32x128xf32>, vector<64x128xf32> -> vector<64x128xf32>
    %c0_4 = arith.constant 0 : index
    %c0_5 = arith.constant 0 : index
    %9 = vector.load %arg3[%c0_4, %c0_5] : memref<32x128xbf16, #tpu.memory_space<vmem>>, vector<32x128xbf16>
    %c0_6 = arith.constant 0 : index
    %c0_7 = arith.constant 0 : index
    %10 = vector.load %arg4[%c0_6, %c0_7] : memref<32x128xbf16, #tpu.memory_space<vmem>>, vector<32x128xbf16>
    %c0_8 = arith.constant 0 : index
    %c0_9 = arith.constant 0 : index
    %11 = vector.load %arg5[%c0_8, %c0_9] : memref<32x128xbf16, #tpu.memory_space<vmem>>, vector<32x128xbf16>
    %c0_10 = arith.constant 0 : index
    %c0_11 = arith.constant 0 : index
    %12 = vector.load %arg6[%c0_10, %c0_11] : memref<1x128xf32, #tpu.memory_space<vmem>>, vector<1x128xf32>
    %13 = vector.shape_cast %12 : vector<1x128xf32> to vector<1x128xf32>
    %14 = vector.broadcast %13 : vector<1x128xf32> to vector<8x128xf32>
    %cst_12 = arith.constant 0.000000e+00 : f32
    %15 = vector.broadcast %cst_12 : f32 to vector<8x32xf32>
    %cst_13 = arith.constant 0.000000e+00 : f32
    %16 = vector.broadcast %cst_13 : f32 to vector<8x32xf32>
    %cst_14 = arith.constant 0.000000e+00 : f32
    %17 = vector.broadcast %cst_14 : f32 to vector<8x32xf32>
    %cst_15 = arith.constant 0.000000e+00 : f32
    %18 = vector.broadcast %cst_15 : f32 to vector<8x32xf32>
    %19 = vector.extract_strided_slice %8 {offsets = [0, 0], sizes = [8, 128], strides = [1, 1]} : vector<64x128xf32> to vector<8x128xf32>
    %20 = arith.truncf %15 : vector<8x32xf32> to vector<8x32xbf16>
    %cst_16 = arith.constant dense<0.000000e+00> : vector<8x128xf32>
    %21 = tpu.matmul %20, %9, %cst_16 {dimension_numbers = #tpu.dot_dimension_numbers<[1], [0], [0], [1], [0, 0, 1, 1], [], []>} : vector<8x32xbf16>, vector<32x128xbf16>, vector<8x128xf32> -> vector<8x128xf32>
    %22 = arith.addf %19, %21 : vector<8x128xf32>
    %23 = vector.extract_strided_slice %22 {offsets = [0, 0], sizes = [8, 96], strides = [1, 1]} : vector<8x128xf32> to vector<8x96xf32>
    %24 = arith.negf %23 : vector<8x96xf32>
    %25 = math.exp %24 : vector<8x96xf32>
    %cst_17 = arith.constant 1.000000e+00 : f32
    %26 = vector.broadcast %cst_17 : f32 to vector<8x96xf32>
    %27 = arith.addf %26, %25 : vector<8x96xf32>
    %28 = arith.divf %26, %27 : vector<8x96xf32>
    %29 = vector.extract_strided_slice %22 {offsets = [0, 96], sizes = [8, 32], strides = [1, 1]} : vector<8x128xf32> to vector<8x32xf32>
    %30 = math.tanh %29 : vector<8x32xf32>
    %31 = vector.extract_strided_slice %28 {offsets = [0, 0], sizes = [8, 32], strides = [1, 1]} : vector<8x96xf32> to vector<8x32xf32>
    %32 = vector.extract_strided_slice %28 {offsets = [0, 32], sizes = [8, 32], strides = [1, 1]} : vector<8x96xf32> to vector<8x32xf32>
    %33 = vector.extract_strided_slice %28 {offsets = [0, 64], sizes = [8, 32], strides = [1, 1]} : vector<8x96xf32> to vector<8x32xf32>
    %34 = arith.mulf %32, %16 : vector<8x32xf32>
    %35 = arith.mulf %31, %30 : vector<8x32xf32>
    %36 = arith.addf %34, %35 : vector<8x32xf32>
    %37 = math.tanh %36 : vector<8x32xf32>
    %38 = arith.mulf %33, %37 : vector<8x32xf32>
    %39 = arith.truncf %38 : vector<8x32xf32> to vector<8x32xbf16>
    %cst_18 = arith.constant dense<0.000000e+00> : vector<8x128xf32>
    %40 = tpu.matmul %39, %11, %cst_18 {dimension_numbers = #tpu.dot_dimension_numbers<[1], [0], [0], [1], [0, 0, 1, 1], [], []>} : vector<8x32xbf16>, vector<32x128xbf16>, vector<8x128xf32> -> vector<8x128xf32>
    %41 = arith.truncf %17 : vector<8x32xf32> to vector<8x32xbf16>
    %cst_19 = arith.constant dense<0.000000e+00> : vector<8x128xf32>
    %42 = tpu.matmul %41, %10, %cst_19 {dimension_numbers = #tpu.dot_dimension_numbers<[1], [0], [0], [1], [0, 0, 1, 1], [], []>} : vector<8x32xbf16>, vector<32x128xbf16>, vector<8x128xf32> -> vector<8x128xf32>
    %43 = arith.addf %40, %42 : vector<8x128xf32>
    %44 = arith.addf %43, %14 : vector<8x128xf32>
    %45 = vector.extract_strided_slice %44 {offsets = [0, 0], sizes = [8, 96], strides = [1, 1]} : vector<8x128xf32> to vector<8x96xf32>
    %46 = arith.negf %45 : vector<8x96xf32>
    %47 = math.exp %46 : vector<8x96xf32>
    %cst_20 = arith.constant 1.000000e+00 : f32
    %48 = vector.broadcast %cst_20 : f32 to vector<8x96xf32>
    %49 = arith.addf %48, %47 : vector<8x96xf32>
    %50 = arith.divf %48, %49 : vector<8x96xf32>
    %51 = vector.extract_strided_slice %44 {offsets = [0, 96], sizes = [8, 32], strides = [1, 1]} : vector<8x128xf32> to vector<8x32xf32>
    %52 = math.tanh %51 : vector<8x32xf32>
    %53 = vector.extract_strided_slice %50 {offsets = [0, 0], sizes = [8, 32], strides = [1, 1]} : vector<8x96xf32> to vector<8x32xf32>
    %54 = vector.extract_strided_slice %50 {offsets = [0, 32], sizes = [8, 32], strides = [1, 1]} : vector<8x96xf32> to vector<8x32xf32>
    %55 = vector.extract_strided_slice %50 {offsets = [0, 64], sizes = [8, 32], strides = [1, 1]} : vector<8x96xf32> to vector<8x32xf32>
    %56 = arith.mulf %54, %18 : vector<8x32xf32>
    %57 = arith.mulf %53, %52 : vector<8x32xf32>
    %58 = arith.addf %56, %57 : vector<8x32xf32>
    %59 = math.tanh %58 : vector<8x32xf32>
    %60 = arith.mulf %55, %59 : vector<8x32xf32>
    %61 = vector.extract_strided_slice %8 {offsets = [8, 0], sizes = [8, 128], strides = [1, 1]} : vector<64x128xf32> to vector<8x128xf32>
    %62 = arith.truncf %38 : vector<8x32xf32> to vector<8x32xbf16>
    %cst_21 = arith.constant dense<0.000000e+00> : vector<8x128xf32>
    %63 = tpu.matmul %62, %9, %cst_21 {dimension_numbers = #tpu.dot_dimension_numbers<[1], [0], [0], [1], [0, 0, 1, 1], [], []>} : vector<8x32xbf16>, vector<32x128xbf16>, vector<8x128xf32> -> vector<8x128xf32>
    %64 = arith.addf %61, %63 : vector<8x128xf32>
    %65 = vector.extract_strided_slice %64 {offsets = [0, 0], sizes = [8, 96], strides = [1, 1]} : vector<8x128xf32> to vector<8x96xf32>
    %66 = arith.negf %65 : vector<8x96xf32>
    %67 = math.exp %66 : vector<8x96xf32>
    %cst_22 = arith.constant 1.000000e+00 : f32
    %68 = vector.broadcast %cst_22 : f32 to vector<8x96xf32>
    %69 = arith.addf %68, %67 : vector<8x96xf32>
    %70 = arith.divf %68, %69 : vector<8x96xf32>
    %71 = vector.extract_strided_slice %64 {offsets = [0, 96], sizes = [8, 32], strides = [1, 1]} : vector<8x128xf32> to vector<8x32xf32>
    %72 = math.tanh %71 : vector<8x32xf32>
    %73 = vector.extract_strided_slice %70 {offsets = [0, 0], sizes = [8, 32], strides = [1, 1]} : vector<8x96xf32> to vector<8x32xf32>
    %74 = vector.extract_strided_slice %70 {offsets = [0, 32], sizes = [8, 32], strides = [1, 1]} : vector<8x96xf32> to vector<8x32xf32>
    %75 = vector.extract_strided_slice %70 {offsets = [0, 64], sizes = [8, 32], strides = [1, 1]} : vector<8x96xf32> to vector<8x32xf32>
    %76 = arith.mulf %74, %36 : vector<8x32xf32>
    %77 = arith.mulf %73, %72 : vector<8x32xf32>
    %78 = arith.addf %76, %77 : vector<8x32xf32>
    %79 = math.tanh %78 : vector<8x32xf32>
    %80 = arith.mulf %75, %79 : vector<8x32xf32>
    %81 = arith.truncf %80 : vector<8x32xf32> to vector<8x32xbf16>
    %cst_23 = arith.constant dense<0.000000e+00> : vector<8x128xf32>
    %82 = tpu.matmul %81, %11, %cst_23 {dimension_numbers = #tpu.dot_dimension_numbers<[1], [0], [0], [1], [0, 0, 1, 1], [], []>} : vector<8x32xbf16>, vector<32x128xbf16>, vector<8x128xf32> -> vector<8x128xf32>
    %83 = arith.truncf %60 : vector<8x32xf32> to vector<8x32xbf16>
    %cst_24 = arith.constant dense<0.000000e+00> : vector<8x128xf32>
    %84 = tpu.matmul %83, %10, %cst_24 {dimension_numbers = #tpu.dot_dimension_numbers<[1], [0], [0], [1], [0, 0, 1, 1], [], []>} : vector<8x32xbf16>, vector<32x128xbf16>, vector<8x128xf32> -> vector<8x128xf32>
    %85 = arith.addf %82, %84 : vector<8x128xf32>
    %86 = arith.addf %85, %14 : vector<8x128xf32>
    %87 = vector.extract_strided_slice %86 {offsets = [0, 0], sizes = [8, 96], strides = [1, 1]} : vector<8x128xf32> to vector<8x96xf32>
    %88 = arith.negf %87 : vector<8x96xf32>
    %89 = math.exp %88 : vector<8x96xf32>
    %cst_25 = arith.constant 1.000000e+00 : f32
    %90 = vector.broadcast %cst_25 : f32 to vector<8x96xf32>
    %91 = arith.addf %90, %89 : vector<8x96xf32>
    %92 = arith.divf %90, %91 : vector<8x96xf32>
    %93 = vector.extract_strided_slice %86 {offsets = [0, 96], sizes = [8, 32], strides = [1, 1]} : vector<8x128xf32> to vector<8x32xf32>
    %94 = math.tanh %93 : vector<8x32xf32>
    %95 = vector.extract_strided_slice %92 {offsets = [0, 0], sizes = [8, 32], strides = [1, 1]} : vector<8x96xf32> to vector<8x32xf32>
    %96 = vector.extract_strided_slice %92 {offsets = [0, 32], sizes = [8, 32], strides = [1, 1]} : vector<8x96xf32> to vector<8x32xf32>
    %97 = vector.extract_strided_slice %92 {offsets = [0, 64], sizes = [8, 32], strides = [1, 1]} : vector<8x96xf32> to vector<8x32xf32>
    %98 = arith.mulf %96, %58 : vector<8x32xf32>
    %99 = arith.mulf %95, %94 : vector<8x32xf32>
    %100 = arith.addf %98, %99 : vector<8x32xf32>
    %101 = math.tanh %100 : vector<8x32xf32>
    %102 = arith.mulf %97, %101 : vector<8x32xf32>
    %103 = vector.extract_strided_slice %8 {offsets = [16, 0], sizes = [8, 128], strides = [1, 1]} : vector<64x128xf32> to vector<8x128xf32>
    %104 = arith.truncf %80 : vector<8x32xf32> to vector<8x32xbf16>
    %cst_26 = arith.constant dense<0.000000e+00> : vector<8x128xf32>
    %105 = tpu.matmul %104, %9, %cst_26 {dimension_numbers = #tpu.dot_dimension_numbers<[1], [0], [0], [1], [0, 0, 1, 1], [], []>} : vector<8x32xbf16>, vector<32x128xbf16>, vector<8x128xf32> -> vector<8x128xf32>
    %106 = arith.addf %103, %105 : vector<8x128xf32>
    %107 = vector.extract_strided_slice %106 {offsets = [0, 0], sizes = [8, 96], strides = [1, 1]} : vector<8x128xf32> to vector<8x96xf32>
    %108 = arith.negf %107 : vector<8x96xf32>
    %109 = math.exp %108 : vector<8x96xf32>
    %cst_27 = arith.constant 1.000000e+00 : f32
    %110 = vector.broadcast %cst_27 : f32 to vector<8x96xf32>
    %111 = arith.addf %110, %109 : vector<8x96xf32>
    %112 = arith.divf %110, %111 : vector<8x96xf32>
    %113 = vector.extract_strided_slice %106 {offsets = [0, 96], sizes = [8, 32], strides = [1, 1]} : vector<8x128xf32> to vector<8x32xf32>
    %114 = math.tanh %113 : vector<8x32xf32>
    %115 = vector.extract_strided_slice %112 {offsets = [0, 0], sizes = [8, 32], strides = [1, 1]} : vector<8x96xf32> to vector<8x32xf32>
    %116 = vector.extract_strided_slice %112 {offsets = [0, 32], sizes = [8, 32], strides = [1, 1]} : vector<8x96xf32> to vector<8x32xf32>
    %117 = vector.extract_strided_slice %112 {offsets = [0, 64], sizes = [8, 32], strides = [1, 1]} : vector<8x96xf32> to vector<8x32xf32>
    %118 = arith.mulf %116, %78 : vector<8x32xf32>
    %119 = arith.mulf %115, %114 : vector<8x32xf32>
    %120 = arith.addf %118, %119 : vector<8x32xf32>
    %121 = math.tanh %120 : vector<8x32xf32>
    %122 = arith.mulf %117, %121 : vector<8x32xf32>
    %123 = arith.truncf %122 : vector<8x32xf32> to vector<8x32xbf16>
    %cst_28 = arith.constant dense<0.000000e+00> : vector<8x128xf32>
    %124 = tpu.matmul %123, %11, %cst_28 {dimension_numbers = #tpu.dot_dimension_numbers<[1], [0], [0], [1], [0, 0, 1, 1], [], []>} : vector<8x32xbf16>, vector<32x128xbf16>, vector<8x128xf32> -> vector<8x128xf32>
    %125 = arith.truncf %102 : vector<8x32xf32> to vector<8x32xbf16>
    %cst_29 = arith.constant dense<0.000000e+00> : vector<8x128xf32>
    %126 = tpu.matmul %125, %10, %cst_29 {dimension_numbers = #tpu.dot_dimension_numbers<[1], [0], [0], [1], [0, 0, 1, 1], [], []>} : vector<8x32xbf16>, vector<32x128xbf16>, vector<8x128xf32> -> vector<8x128xf32>
    %127 = arith.addf %124, %126 : vector<8x128xf32>
    %128 = arith.addf %127, %14 : vector<8x128xf32>
    %129 = vector.extract_strided_slice %128 {offsets = [0, 0], sizes = [8, 96], strides = [1, 1]} : vector<8x128xf32> to vector<8x96xf32>
    %130 = arith.negf %129 : vector<8x96xf32>
    %131 = math.exp %130 : vector<8x96xf32>
    %cst_30 = arith.constant 1.000000e+00 : f32
    %132 = vector.broadcast %cst_30 : f32 to vector<8x96xf32>
    %133 = arith.addf %132, %131 : vector<8x96xf32>
    %134 = arith.divf %132, %133 : vector<8x96xf32>
    %135 = vector.extract_strided_slice %128 {offsets = [0, 96], sizes = [8, 32], strides = [1, 1]} : vector<8x128xf32> to vector<8x32xf32>
    %136 = math.tanh %135 : vector<8x32xf32>
    %137 = vector.extract_strided_slice %134 {offsets = [0, 0], sizes = [8, 32], strides = [1, 1]} : vector<8x96xf32> to vector<8x32xf32>
    %138 = vector.extract_strided_slice %134 {offsets = [0, 32], sizes = [8, 32], strides = [1, 1]} : vector<8x96xf32> to vector<8x32xf32>
    %139 = vector.extract_strided_slice %134 {offsets = [0, 64], sizes = [8, 32], strides = [1, 1]} : vector<8x96xf32> to vector<8x32xf32>
    %140 = arith.mulf %138, %100 : vector<8x32xf32>
    %141 = arith.mulf %137, %136 : vector<8x32xf32>
    %142 = arith.addf %140, %141 : vector<8x32xf32>
    %143 = math.tanh %142 : vector<8x32xf32>
    %144 = arith.mulf %139, %143 : vector<8x32xf32>
    %145 = vector.extract_strided_slice %8 {offsets = [24, 0], sizes = [8, 128], strides = [1, 1]} : vector<64x128xf32> to vector<8x128xf32>
    %146 = arith.truncf %122 : vector<8x32xf32> to vector<8x32xbf16>
    %cst_31 = arith.constant dense<0.000000e+00> : vector<8x128xf32>
    %147 = tpu.matmul %146, %9, %cst_31 {dimension_numbers = #tpu.dot_dimension_numbers<[1], [0], [0], [1], [0, 0, 1, 1], [], []>} : vector<8x32xbf16>, vector<32x128xbf16>, vector<8x128xf32> -> vector<8x128xf32>
    %148 = arith.addf %145, %147 : vector<8x128xf32>
    %149 = vector.extract_strided_slice %148 {offsets = [0, 0], sizes = [8, 96], strides = [1, 1]} : vector<8x128xf32> to vector<8x96xf32>
    %150 = arith.negf %149 : vector<8x96xf32>
    %151 = math.exp %150 : vector<8x96xf32>
    %cst_32 = arith.constant 1.000000e+00 : f32
    %152 = vector.broadcast %cst_32 : f32 to vector<8x96xf32>
    %153 = arith.addf %152, %151 : vector<8x96xf32>
    %154 = arith.divf %152, %153 : vector<8x96xf32>
    %155 = vector.extract_strided_slice %148 {offsets = [0, 96], sizes = [8, 32], strides = [1, 1]} : vector<8x128xf32> to vector<8x32xf32>
    %156 = math.tanh %155 : vector<8x32xf32>
    %157 = vector.extract_strided_slice %154 {offsets = [0, 0], sizes = [8, 32], strides = [1, 1]} : vector<8x96xf32> to vector<8x32xf32>
    %158 = vector.extract_strided_slice %154 {offsets = [0, 32], sizes = [8, 32], strides = [1, 1]} : vector<8x96xf32> to vector<8x32xf32>
    %159 = vector.extract_strided_slice %154 {offsets = [0, 64], sizes = [8, 32], strides = [1, 1]} : vector<8x96xf32> to vector<8x32xf32>
    %160 = arith.mulf %158, %120 : vector<8x32xf32>
    %161 = arith.mulf %157, %156 : vector<8x32xf32>
    %162 = arith.addf %160, %161 : vector<8x32xf32>
    %163 = math.tanh %162 : vector<8x32xf32>
    %164 = arith.mulf %159, %163 : vector<8x32xf32>
    %165 = arith.truncf %164 : vector<8x32xf32> to vector<8x32xbf16>
    %cst_33 = arith.constant dense<0.000000e+00> : vector<8x128xf32>
    %166 = tpu.matmul %165, %11, %cst_33 {dimension_numbers = #tpu.dot_dimension_numbers<[1], [0], [0], [1], [0, 0, 1, 1], [], []>} : vector<8x32xbf16>, vector<32x128xbf16>, vector<8x128xf32> -> vector<8x128xf32>
    %167 = arith.truncf %144 : vector<8x32xf32> to vector<8x32xbf16>
    %cst_34 = arith.constant dense<0.000000e+00> : vector<8x128xf32>
    %168 = tpu.matmul %167, %10, %cst_34 {dimension_numbers = #tpu.dot_dimension_numbers<[1], [0], [0], [1], [0, 0, 1, 1], [], []>} : vector<8x32xbf16>, vector<32x128xbf16>, vector<8x128xf32> -> vector<8x128xf32>
    %169 = arith.addf %166, %168 : vector<8x128xf32>
    %170 = arith.addf %169, %14 : vector<8x128xf32>
    %171 = vector.extract_strided_slice %170 {offsets = [0, 0], sizes = [8, 96], strides = [1, 1]} : vector<8x128xf32> to vector<8x96xf32>
    %172 = arith.negf %171 : vector<8x96xf32>
    %173 = math.exp %172 : vector<8x96xf32>
    %cst_35 = arith.constant 1.000000e+00 : f32
    %174 = vector.broadcast %cst_35 : f32 to vector<8x96xf32>
    %175 = arith.addf %174, %173 : vector<8x96xf32>
    %176 = arith.divf %174, %175 : vector<8x96xf32>
    %177 = vector.extract_strided_slice %170 {offsets = [0, 96], sizes = [8, 32], strides = [1, 1]} : vector<8x128xf32> to vector<8x32xf32>
    %178 = math.tanh %177 : vector<8x32xf32>
    %179 = vector.extract_strided_slice %176 {offsets = [0, 0], sizes = [8, 32], strides = [1, 1]} : vector<8x96xf32> to vector<8x32xf32>
    %180 = vector.extract_strided_slice %176 {offsets = [0, 32], sizes = [8, 32], strides = [1, 1]} : vector<8x96xf32> to vector<8x32xf32>
    %181 = vector.extract_strided_slice %176 {offsets = [0, 64], sizes = [8, 32], strides = [1, 1]} : vector<8x96xf32> to vector<8x32xf32>
    %182 = arith.mulf %180, %142 : vector<8x32xf32>
    %183 = arith.mulf %179, %178 : vector<8x32xf32>
    %184 = arith.addf %182, %183 : vector<8x32xf32>
    %185 = math.tanh %184 : vector<8x32xf32>
    %186 = arith.mulf %181, %185 : vector<8x32xf32>
    %187 = vector.extract_strided_slice %8 {offsets = [32, 0], sizes = [8, 128], strides = [1, 1]} : vector<64x128xf32> to vector<8x128xf32>
    %188 = arith.truncf %164 : vector<8x32xf32> to vector<8x32xbf16>
    %cst_36 = arith.constant dense<0.000000e+00> : vector<8x128xf32>
    %189 = tpu.matmul %188, %9, %cst_36 {dimension_numbers = #tpu.dot_dimension_numbers<[1], [0], [0], [1], [0, 0, 1, 1], [], []>} : vector<8x32xbf16>, vector<32x128xbf16>, vector<8x128xf32> -> vector<8x128xf32>
    %190 = arith.addf %187, %189 : vector<8x128xf32>
    %191 = vector.extract_strided_slice %190 {offsets = [0, 0], sizes = [8, 96], strides = [1, 1]} : vector<8x128xf32> to vector<8x96xf32>
    %192 = arith.negf %191 : vector<8x96xf32>
    %193 = math.exp %192 : vector<8x96xf32>
    %cst_37 = arith.constant 1.000000e+00 : f32
    %194 = vector.broadcast %cst_37 : f32 to vector<8x96xf32>
    %195 = arith.addf %194, %193 : vector<8x96xf32>
    %196 = arith.divf %194, %195 : vector<8x96xf32>
    %197 = vector.extract_strided_slice %190 {offsets = [0, 96], sizes = [8, 32], strides = [1, 1]} : vector<8x128xf32> to vector<8x32xf32>
    %198 = math.tanh %197 : vector<8x32xf32>
    %199 = vector.extract_strided_slice %196 {offsets = [0, 0], sizes = [8, 32], strides = [1, 1]} : vector<8x96xf32> to vector<8x32xf32>
    %200 = vector.extract_strided_slice %196 {offsets = [0, 32], sizes = [8, 32], strides = [1, 1]} : vector<8x96xf32> to vector<8x32xf32>
    %201 = vector.extract_strided_slice %196 {offsets = [0, 64], sizes = [8, 32], strides = [1, 1]} : vector<8x96xf32> to vector<8x32xf32>
    %202 = arith.mulf %200, %162 : vector<8x32xf32>
    %203 = arith.mulf %199, %198 : vector<8x32xf32>
    %204 = arith.addf %202, %203 : vector<8x32xf32>
    %205 = math.tanh %204 : vector<8x32xf32>
    %206 = arith.mulf %201, %205 : vector<8x32xf32>
    %207 = arith.truncf %206 : vector<8x32xf32> to vector<8x32xbf16>
    %cst_38 = arith.constant dense<0.000000e+00> : vector<8x128xf32>
    %208 = tpu.matmul %207, %11, %cst_38 {dimension_numbers = #tpu.dot_dimension_numbers<[1], [0], [0], [1], [0, 0, 1, 1], [], []>} : vector<8x32xbf16>, vector<32x128xbf16>, vector<8x128xf32> -> vector<8x128xf32>
    %209 = arith.truncf %186 : vector<8x32xf32> to vector<8x32xbf16>
    %cst_39 = arith.constant dense<0.000000e+00> : vector<8x128xf32>
    %210 = tpu.matmul %209, %10, %cst_39 {dimension_numbers = #tpu.dot_dimension_numbers<[1], [0], [0], [1], [0, 0, 1, 1], [], []>} : vector<8x32xbf16>, vector<32x128xbf16>, vector<8x128xf32> -> vector<8x128xf32>
    %211 = arith.addf %208, %210 : vector<8x128xf32>
    %212 = arith.addf %211, %14 : vector<8x128xf32>
    %213 = vector.extract_strided_slice %212 {offsets = [0, 0], sizes = [8, 96], strides = [1, 1]} : vector<8x128xf32> to vector<8x96xf32>
    %214 = arith.negf %213 : vector<8x96xf32>
    %215 = math.exp %214 : vector<8x96xf32>
    %cst_40 = arith.constant 1.000000e+00 : f32
    %216 = vector.broadcast %cst_40 : f32 to vector<8x96xf32>
    %217 = arith.addf %216, %215 : vector<8x96xf32>
    %218 = arith.divf %216, %217 : vector<8x96xf32>
    %219 = vector.extract_strided_slice %212 {offsets = [0, 96], sizes = [8, 32], strides = [1, 1]} : vector<8x128xf32> to vector<8x32xf32>
    %220 = math.tanh %219 : vector<8x32xf32>
    %221 = vector.extract_strided_slice %218 {offsets = [0, 0], sizes = [8, 32], strides = [1, 1]} : vector<8x96xf32> to vector<8x32xf32>
    %222 = vector.extract_strided_slice %218 {offsets = [0, 32], sizes = [8, 32], strides = [1, 1]} : vector<8x96xf32> to vector<8x32xf32>
    %223 = vector.extract_strided_slice %218 {offsets = [0, 64], sizes = [8, 32], strides = [1, 1]} : vector<8x96xf32> to vector<8x32xf32>
    %224 = arith.mulf %222, %184 : vector<8x32xf32>
    %225 = arith.mulf %221, %220 : vector<8x32xf32>
    %226 = arith.addf %224, %225 : vector<8x32xf32>
    %227 = math.tanh %226 : vector<8x32xf32>
    %228 = arith.mulf %223, %227 : vector<8x32xf32>
    %229 = vector.extract_strided_slice %8 {offsets = [40, 0], sizes = [8, 128], strides = [1, 1]} : vector<64x128xf32> to vector<8x128xf32>
    %230 = arith.truncf %206 : vector<8x32xf32> to vector<8x32xbf16>
    %cst_41 = arith.constant dense<0.000000e+00> : vector<8x128xf32>
    %231 = tpu.matmul %230, %9, %cst_41 {dimension_numbers = #tpu.dot_dimension_numbers<[1], [0], [0], [1], [0, 0, 1, 1], [], []>} : vector<8x32xbf16>, vector<32x128xbf16>, vector<8x128xf32> -> vector<8x128xf32>
    %232 = arith.addf %229, %231 : vector<8x128xf32>
    %233 = vector.extract_strided_slice %232 {offsets = [0, 0], sizes = [8, 96], strides = [1, 1]} : vector<8x128xf32> to vector<8x96xf32>
    %234 = arith.negf %233 : vector<8x96xf32>
    %235 = math.exp %234 : vector<8x96xf32>
    %cst_42 = arith.constant 1.000000e+00 : f32
    %236 = vector.broadcast %cst_42 : f32 to vector<8x96xf32>
    %237 = arith.addf %236, %235 : vector<8x96xf32>
    %238 = arith.divf %236, %237 : vector<8x96xf32>
    %239 = vector.extract_strided_slice %232 {offsets = [0, 96], sizes = [8, 32], strides = [1, 1]} : vector<8x128xf32> to vector<8x32xf32>
    %240 = math.tanh %239 : vector<8x32xf32>
    %241 = vector.extract_strided_slice %238 {offsets = [0, 0], sizes = [8, 32], strides = [1, 1]} : vector<8x96xf32> to vector<8x32xf32>
    %242 = vector.extract_strided_slice %238 {offsets = [0, 32], sizes = [8, 32], strides = [1, 1]} : vector<8x96xf32> to vector<8x32xf32>
    %243 = vector.extract_strided_slice %238 {offsets = [0, 64], sizes = [8, 32], strides = [1, 1]} : vector<8x96xf32> to vector<8x32xf32>
    %244 = arith.mulf %242, %204 : vector<8x32xf32>
    %245 = arith.mulf %241, %240 : vector<8x32xf32>
    %246 = arith.addf %244, %245 : vector<8x32xf32>
    %247 = math.tanh %246 : vector<8x32xf32>
    %248 = arith.mulf %243, %247 : vector<8x32xf32>
    %249 = arith.truncf %248 : vector<8x32xf32> to vector<8x32xbf16>
    %cst_43 = arith.constant dense<0.000000e+00> : vector<8x128xf32>
    %250 = tpu.matmul %249, %11, %cst_43 {dimension_numbers = #tpu.dot_dimension_numbers<[1], [0], [0], [1], [0, 0, 1, 1], [], []>} : vector<8x32xbf16>, vector<32x128xbf16>, vector<8x128xf32> -> vector<8x128xf32>
    %251 = arith.truncf %228 : vector<8x32xf32> to vector<8x32xbf16>
    %cst_44 = arith.constant dense<0.000000e+00> : vector<8x128xf32>
    %252 = tpu.matmul %251, %10, %cst_44 {dimension_numbers = #tpu.dot_dimension_numbers<[1], [0], [0], [1], [0, 0, 1, 1], [], []>} : vector<8x32xbf16>, vector<32x128xbf16>, vector<8x128xf32> -> vector<8x128xf32>
    %253 = arith.addf %250, %252 : vector<8x128xf32>
    %254 = arith.addf %253, %14 : vector<8x128xf32>
    %255 = vector.extract_strided_slice %254 {offsets = [0, 0], sizes = [8, 96], strides = [1, 1]} : vector<8x128xf32> to vector<8x96xf32>
    %256 = arith.negf %255 : vector<8x96xf32>
    %257 = math.exp %256 : vector<8x96xf32>
    %cst_45 = arith.constant 1.000000e+00 : f32
    %258 = vector.broadcast %cst_45 : f32 to vector<8x96xf32>
    %259 = arith.addf %258, %257 : vector<8x96xf32>
    %260 = arith.divf %258, %259 : vector<8x96xf32>
    %261 = vector.extract_strided_slice %254 {offsets = [0, 96], sizes = [8, 32], strides = [1, 1]} : vector<8x128xf32> to vector<8x32xf32>
    %262 = math.tanh %261 : vector<8x32xf32>
    %263 = vector.extract_strided_slice %260 {offsets = [0, 0], sizes = [8, 32], strides = [1, 1]} : vector<8x96xf32> to vector<8x32xf32>
    %264 = vector.extract_strided_slice %260 {offsets = [0, 32], sizes = [8, 32], strides = [1, 1]} : vector<8x96xf32> to vector<8x32xf32>
    %265 = vector.extract_strided_slice %260 {offsets = [0, 64], sizes = [8, 32], strides = [1, 1]} : vector<8x96xf32> to vector<8x32xf32>
    %266 = arith.mulf %264, %226 : vector<8x32xf32>
    %267 = arith.mulf %263, %262 : vector<8x32xf32>
    %268 = arith.addf %266, %267 : vector<8x32xf32>
    %269 = math.tanh %268 : vector<8x32xf32>
    %270 = arith.mulf %265, %269 : vector<8x32xf32>
    %271 = vector.extract_strided_slice %8 {offsets = [48, 0], sizes = [8, 128], strides = [1, 1]} : vector<64x128xf32> to vector<8x128xf32>
    %272 = arith.truncf %248 : vector<8x32xf32> to vector<8x32xbf16>
    %cst_46 = arith.constant dense<0.000000e+00> : vector<8x128xf32>
    %273 = tpu.matmul %272, %9, %cst_46 {dimension_numbers = #tpu.dot_dimension_numbers<[1], [0], [0], [1], [0, 0, 1, 1], [], []>} : vector<8x32xbf16>, vector<32x128xbf16>, vector<8x128xf32> -> vector<8x128xf32>
    %274 = arith.addf %271, %273 : vector<8x128xf32>
    %275 = vector.extract_strided_slice %274 {offsets = [0, 0], sizes = [8, 96], strides = [1, 1]} : vector<8x128xf32> to vector<8x96xf32>
    %276 = arith.negf %275 : vector<8x96xf32>
    %277 = math.exp %276 : vector<8x96xf32>
    %cst_47 = arith.constant 1.000000e+00 : f32
    %278 = vector.broadcast %cst_47 : f32 to vector<8x96xf32>
    %279 = arith.addf %278, %277 : vector<8x96xf32>
    %280 = arith.divf %278, %279 : vector<8x96xf32>
    %281 = vector.extract_strided_slice %274 {offsets = [0, 96], sizes = [8, 32], strides = [1, 1]} : vector<8x128xf32> to vector<8x32xf32>
    %282 = math.tanh %281 : vector<8x32xf32>
    %283 = vector.extract_strided_slice %280 {offsets = [0, 0], sizes = [8, 32], strides = [1, 1]} : vector<8x96xf32> to vector<8x32xf32>
    %284 = vector.extract_strided_slice %280 {offsets = [0, 32], sizes = [8, 32], strides = [1, 1]} : vector<8x96xf32> to vector<8x32xf32>
    %285 = vector.extract_strided_slice %280 {offsets = [0, 64], sizes = [8, 32], strides = [1, 1]} : vector<8x96xf32> to vector<8x32xf32>
    %286 = arith.mulf %284, %246 : vector<8x32xf32>
    %287 = arith.mulf %283, %282 : vector<8x32xf32>
    %288 = arith.addf %286, %287 : vector<8x32xf32>
    %289 = math.tanh %288 : vector<8x32xf32>
    %290 = arith.mulf %285, %289 : vector<8x32xf32>
    %291 = arith.truncf %290 : vector<8x32xf32> to vector<8x32xbf16>
    %cst_48 = arith.constant dense<0.000000e+00> : vector<8x128xf32>
    %292 = tpu.matmul %291, %11, %cst_48 {dimension_numbers = #tpu.dot_dimension_numbers<[1], [0], [0], [1], [0, 0, 1, 1], [], []>} : vector<8x32xbf16>, vector<32x128xbf16>, vector<8x128xf32> -> vector<8x128xf32>
    %293 = arith.truncf %270 : vector<8x32xf32> to vector<8x32xbf16>
    %cst_49 = arith.constant dense<0.000000e+00> : vector<8x128xf32>
    %294 = tpu.matmul %293, %10, %cst_49 {dimension_numbers = #tpu.dot_dimension_numbers<[1], [0], [0], [1], [0, 0, 1, 1], [], []>} : vector<8x32xbf16>, vector<32x128xbf16>, vector<8x128xf32> -> vector<8x128xf32>
    %295 = arith.addf %292, %294 : vector<8x128xf32>
    %296 = arith.addf %295, %14 : vector<8x128xf32>
    %297 = vector.extract_strided_slice %296 {offsets = [0, 0], sizes = [8, 96], strides = [1, 1]} : vector<8x128xf32> to vector<8x96xf32>
    %298 = arith.negf %297 : vector<8x96xf32>
    %299 = math.exp %298 : vector<8x96xf32>
    %cst_50 = arith.constant 1.000000e+00 : f32
    %300 = vector.broadcast %cst_50 : f32 to vector<8x96xf32>
    %301 = arith.addf %300, %299 : vector<8x96xf32>
    %302 = arith.divf %300, %301 : vector<8x96xf32>
    %303 = vector.extract_strided_slice %296 {offsets = [0, 96], sizes = [8, 32], strides = [1, 1]} : vector<8x128xf32> to vector<8x32xf32>
    %304 = math.tanh %303 : vector<8x32xf32>
    %305 = vector.extract_strided_slice %302 {offsets = [0, 0], sizes = [8, 32], strides = [1, 1]} : vector<8x96xf32> to vector<8x32xf32>
    %306 = vector.extract_strided_slice %302 {offsets = [0, 32], sizes = [8, 32], strides = [1, 1]} : vector<8x96xf32> to vector<8x32xf32>
    %307 = vector.extract_strided_slice %302 {offsets = [0, 64], sizes = [8, 32], strides = [1, 1]} : vector<8x96xf32> to vector<8x32xf32>
    %308 = arith.mulf %306, %268 : vector<8x32xf32>
    %309 = arith.mulf %305, %304 : vector<8x32xf32>
    %310 = arith.addf %308, %309 : vector<8x32xf32>
    %311 = math.tanh %310 : vector<8x32xf32>
    %312 = arith.mulf %307, %311 : vector<8x32xf32>
    %313 = vector.extract_strided_slice %8 {offsets = [56, 0], sizes = [8, 128], strides = [1, 1]} : vector<64x128xf32> to vector<8x128xf32>
    %314 = arith.truncf %290 : vector<8x32xf32> to vector<8x32xbf16>
    %cst_51 = arith.constant dense<0.000000e+00> : vector<8x128xf32>
    %315 = tpu.matmul %314, %9, %cst_51 {dimension_numbers = #tpu.dot_dimension_numbers<[1], [0], [0], [1], [0, 0, 1, 1], [], []>} : vector<8x32xbf16>, vector<32x128xbf16>, vector<8x128xf32> -> vector<8x128xf32>
    %316 = arith.addf %313, %315 : vector<8x128xf32>
    %317 = vector.extract_strided_slice %316 {offsets = [0, 0], sizes = [8, 96], strides = [1, 1]} : vector<8x128xf32> to vector<8x96xf32>
    %318 = arith.negf %317 : vector<8x96xf32>
    %319 = math.exp %318 : vector<8x96xf32>
    %cst_52 = arith.constant 1.000000e+00 : f32
    %320 = vector.broadcast %cst_52 : f32 to vector<8x96xf32>
    %321 = arith.addf %320, %319 : vector<8x96xf32>
    %322 = arith.divf %320, %321 : vector<8x96xf32>
    %323 = vector.extract_strided_slice %316 {offsets = [0, 96], sizes = [8, 32], strides = [1, 1]} : vector<8x128xf32> to vector<8x32xf32>
    %324 = math.tanh %323 : vector<8x32xf32>
    %325 = vector.extract_strided_slice %322 {offsets = [0, 0], sizes = [8, 32], strides = [1, 1]} : vector<8x96xf32> to vector<8x32xf32>
    %326 = vector.extract_strided_slice %322 {offsets = [0, 32], sizes = [8, 32], strides = [1, 1]} : vector<8x96xf32> to vector<8x32xf32>
    %327 = vector.extract_strided_slice %322 {offsets = [0, 64], sizes = [8, 32], strides = [1, 1]} : vector<8x96xf32> to vector<8x32xf32>
    %328 = arith.mulf %326, %288 : vector<8x32xf32>
    %329 = arith.mulf %325, %324 : vector<8x32xf32>
    %330 = arith.addf %328, %329 : vector<8x32xf32>
    %331 = math.tanh %330 : vector<8x32xf32>
    %332 = arith.mulf %327, %331 : vector<8x32xf32>
    %333 = arith.truncf %332 : vector<8x32xf32> to vector<8x32xbf16>
    %cst_53 = arith.constant dense<0.000000e+00> : vector<8x128xf32>
    %334 = tpu.matmul %333, %11, %cst_53 {dimension_numbers = #tpu.dot_dimension_numbers<[1], [0], [0], [1], [0, 0, 1, 1], [], []>} : vector<8x32xbf16>, vector<32x128xbf16>, vector<8x128xf32> -> vector<8x128xf32>
    %335 = arith.truncf %312 : vector<8x32xf32> to vector<8x32xbf16>
    %cst_54 = arith.constant dense<0.000000e+00> : vector<8x128xf32>
    %336 = tpu.matmul %335, %10, %cst_54 {dimension_numbers = #tpu.dot_dimension_numbers<[1], [0], [0], [1], [0, 0, 1, 1], [], []>} : vector<8x32xbf16>, vector<32x128xbf16>, vector<8x128xf32> -> vector<8x128xf32>
    %337 = arith.addf %334, %336 : vector<8x128xf32>
    %338 = arith.addf %337, %14 : vector<8x128xf32>
    %339 = vector.extract_strided_slice %338 {offsets = [0, 0], sizes = [8, 96], strides = [1, 1]} : vector<8x128xf32> to vector<8x96xf32>
    %340 = arith.negf %339 : vector<8x96xf32>
    %341 = math.exp %340 : vector<8x96xf32>
    %cst_55 = arith.constant 1.000000e+00 : f32
    %342 = vector.broadcast %cst_55 : f32 to vector<8x96xf32>
    %343 = arith.addf %342, %341 : vector<8x96xf32>
    %344 = arith.divf %342, %343 : vector<8x96xf32>
    %345 = vector.extract_strided_slice %338 {offsets = [0, 96], sizes = [8, 32], strides = [1, 1]} : vector<8x128xf32> to vector<8x32xf32>
    %346 = math.tanh %345 : vector<8x32xf32>
    %347 = vector.extract_strided_slice %344 {offsets = [0, 0], sizes = [8, 32], strides = [1, 1]} : vector<8x96xf32> to vector<8x32xf32>
    %348 = vector.extract_strided_slice %344 {offsets = [0, 32], sizes = [8, 32], strides = [1, 1]} : vector<8x96xf32> to vector<8x32xf32>
    %349 = vector.extract_strided_slice %344 {offsets = [0, 64], sizes = [8, 32], strides = [1, 1]} : vector<8x96xf32> to vector<8x32xf32>
    %350 = arith.mulf %348, %310 : vector<8x32xf32>
    %351 = arith.mulf %347, %346 : vector<8x32xf32>
    %352 = arith.addf %350, %351 : vector<8x32xf32>
    %353 = math.tanh %352 : vector<8x32xf32>
    %354 = arith.mulf %349, %353 : vector<8x32xf32>
    %c0_56 = arith.constant 0 : index
    %c0_57 = arith.constant 0 : index
    %355 = vector.load %arg7[%c0_56, %c0_57] : memref<1x32xf32, #tpu.memory_space<vmem>>, vector<1x32xf32>
    %356 = tpu.transpose %354, [1, 0] : vector<8x32xf32> -> vector<32x8xf32>
    %cst_58 = arith.constant dense<0.000000e+00> : vector<1x8xf32>
    %357 = tpu.matmul %355, %356, %cst_58 {dimension_numbers = #tpu.dot_dimension_numbers<[1], [0], [0], [1], [0, 0, 1, 1], [], []>} : vector<1x32xf32>, vector<32x8xf32>, vector<1x8xf32> -> vector<1x8xf32>
    %c0_59 = arith.constant 0 : index
    %c0_60 = arith.constant 0 : index
    %358 = vector.load %arg8[%c0_59, %c0_60] : memref<1x1xf32, #tpu.memory_space<vmem>>, vector<1x1xf32>
    %359 = vector.broadcast %358 : vector<1x1xf32> to vector<1x8xf32>
    %360 = arith.addf %357, %359 : vector<1x8xf32>
    %361 = arith.negf %360 : vector<1x8xf32>
    %362 = math.exp %361 : vector<1x8xf32>
    %cst_61 = arith.constant 1.000000e+00 : f32
    %363 = vector.broadcast %cst_61 : f32 to vector<1x8xf32>
    %364 = arith.addf %363, %362 : vector<1x8xf32>
    %365 = arith.divf %363, %364 : vector<1x8xf32>
    %366 = vector.shape_cast %365 : vector<1x8xf32> to vector<1x1x8xf32>
    %c0_62 = arith.constant 0 : index
    %c0_63 = arith.constant 0 : index
    %c0_64 = arith.constant 0 : index
    %367 = vector.load %arg9[%c0_62, %c0_63, %c0_64] : memref<1x1x8xf32, #tpu.memory_space<vmem>>, vector<1x1x8xf32>
    tpu.vector_store %arg9[%c0_62, %c0_63, %c0_64], %366 {strides = array<i32>} : memref<1x1x8xf32, #tpu.memory_space<vmem>>, vector<1x1x8xf32>,
    return
  }
  func.func @transform_0(%arg0: i32) -> (i32, i32, i32) {
    %c0_i32 = arith.constant 0 : i32
    %c0_i32_0 = arith.constant 0 : i32
    %c0_i32_1 = arith.constant 0 : i32
    return %arg0, %c0_i32, %c0_i32_0 : i32, i32, i32
  }
  func.func @transform_1(%arg0: i32) -> (i32, i32) {
    %c0_i32 = arith.constant 0 : i32
    %c0_i32_0 = arith.constant 0 : i32
    %c0_i32_1 = arith.constant 0 : i32
    return %c0_i32, %c0_i32_0 : i32, i32
  }
  func.func @transform_2(%arg0: i32) -> (i32, i32) {
    %c0_i32 = arith.constant 0 : i32
    %c0_i32_0 = arith.constant 0 : i32
    %c0_i32_1 = arith.constant 0 : i32
    return %c0_i32, %c0_i32_0 : i32, i32
  }
  func.func @transform_3(%arg0: i32) -> (i32, i32) {
    %c0_i32 = arith.constant 0 : i32
    %c0_i32_0 = arith.constant 0 : i32
    %c0_i32_1 = arith.constant 0 : i32
    return %c0_i32, %c0_i32_0 : i32, i32
  }
  func.func @transform_4(%arg0: i32) -> (i32, i32) {
    %c0_i32 = arith.constant 0 : i32
    %c0_i32_0 = arith.constant 0 : i32
    %c0_i32_1 = arith.constant 0 : i32
    return %c0_i32, %c0_i32_0 : i32, i32
  }
  func.func @transform_5(%arg0: i32) -> (i32, i32) {
    %c0_i32 = arith.constant 0 : i32
    %c0_i32_0 = arith.constant 0 : i32
    %c0_i32_1 = arith.constant 0 : i32
    return %c0_i32, %c0_i32_0 : i32, i32
  }
  func.func @transform_6(%arg0: i32) -> (i32, i32) {
    %c0_i32 = arith.constant 0 : i32
    %c0_i32_0 = arith.constant 0 : i32
    %c0_i32_1 = arith.constant 0 : i32
    return %c0_i32, %c0_i32_0 : i32, i32
  }
  func.func @transform_7(%arg0: i32) -> (i32, i32) {
    %c0_i32 = arith.constant 0 : i32
    %c0_i32_0 = arith.constant 0 : i32
    %c0_i32_1 = arith.constant 0 : i32
    return %c0_i32, %c0_i32_0 : i32, i32
  }
  func.func @transform_8(%arg0: i32) -> (i32, i32, i32) {
    %c0_i32 = arith.constant 0 : i32
    %c0_i32_0 = arith.constant 0 : i32
    %c0_i32_1 = arith.constant 0 : i32
    return %arg0, %c0_i32, %c0_i32_0 : i32, i32, i32
  }
}

</mosaic_0001>

<llo_original>
// kernel: password_rnn_forward.1
$region0: #{password_rnn_forward.1}
  #allocation0 [shape = 'u32[]', space=smem, size = 0x4, offset = 0x4, fixed_abs, tag = 'smem constant byte address 0x4 - core index']
  #allocation1 [shape = 'u32[72,128]{1,0:T(1,128)}', space=vmem, size = 0x9000, scoped, tag = 'internal scratch']
  #allocation2 [shape = 'f32[1,1]{1,0:T(1,128)S(1)}', space=vmem, size = 0x200, scoped, tag = 'scoped memory for password_rnn_forward.1']
  %s0 = inlined_call_operand.vmem [shape: s32[1,64,1], index: 0, kind: input, shape index: {}]
  %s1 = inlined_call_operand.vmem [shape: f32[32,128], index: 1, kind: input, shape index: {}]
  %s2 = inlined_call_operand.vmem [shape: bf16[32,128], index: 2, kind: input, shape index: {}]
  %s3 = inlined_call_operand.vmem [shape: bf16[32,128], index: 3, kind: input, shape index: {}]
  %s4 = inlined_call_operand.vmem [shape: bf16[32,128], index: 4, kind: input, shape index: {}]
  %s5 = inlined_call_operand.vmem [shape: f32[1,128], index: 5, kind: input, shape index: {}]
  %s6 = inlined_call_operand.vmem [shape: f32[1,32], index: 6, kind: input, shape index: {}]
  %s7 = inlined_call_operand.<no memory space> [shape: f32[1,1], index: 7, kind: input, shape index: {}]
  %s8 = inlined_call_operand.vmem [shape: f32[1,1,8], index: 8, kind: output, shape index: {}]
  %s9 = sld [smem:[#allocation0]]
  $region42: #{password_rnn_forward.1} parent=0
    _
  %s11 = ssub.s32 1, %s9
  %s12 = scalar_select 0, %s11, %s9
  %v13 = vstv %s7
  %14 = vst [vmem:[#allocation2] sm:$0x1] %v13
  // Predicated region
  $region2: #{password_rnn_forward.1} parent=0 // pred_check
    _
  $region3: #{password_rnn_forward.1} parent=0 // pred_check_branch
    %16 = sbr.rel (0) target = $region5
  $region4: #{password_rnn_forward.1} parent=0 // pred_region
    _
  $region5: #{password_rnn_forward.1} parent=0 // pred_fallthru
    _
  // Predicated region
  $region6: #{password_rnn_forward.1} parent=0 // pred_check
    _
  $region7: #{password_rnn_forward.1} parent=0 // pred_check_branch
    %18 = sbr.rel (0) target = $region9
  $region8: #{password_rnn_forward.1} parent=0 // pred_region
    _
  $region9: #{password_rnn_forward.1} parent=0 // pred_fallthru
    _
  // Predicated region
  $region10: #{password_rnn_forward.1} parent=0 // pred_check
    _
  $region11: #{password_rnn_forward.1} parent=0 // pred_check_branch
    %20 = sbr.rel (0) target = $region13
  $region12: #{password_rnn_forward.1} parent=0 // pred_region
    _
  $region13: #{password_rnn_forward.1} parent=0 // pred_fallthru
    _
  // Predicated region
  $region14: #{password_rnn_forward.1} parent=0 // pred_check
    _
  $region15: #{password_rnn_forward.1} parent=0 // pred_check_branch
    %22 = sbr.rel (0) target = $region17
  $region16: #{password_rnn_forward.1} parent=0 // pred_region
    _
  $region17: #{password_rnn_forward.1} parent=0 // pred_fallthru
    _
  // Predicated region
  $region18: #{password_rnn_forward.1} parent=0 // pred_check
    _
  $region19: #{password_rnn_forward.1} parent=0 // pred_check_branch
    %24 = sbr.rel (0) target = $region21
  $region20: #{password_rnn_forward.1} parent=0 // pred_region
    _
  $region21: #{password_rnn_forward.1} parent=0 // pred_fallthru
    _
  // Predicated region
  $region22: #{password_rnn_forward.1} parent=0 // pred_check
    _
  $region23: #{password_rnn_forward.1} parent=0 // pred_check_branch
    %26 = sbr.rel (0) target = $region25
  $region24: #{password_rnn_forward.1} parent=0 // pred_region
    _
  $region25: #{password_rnn_forward.1} parent=0 // pred_fallthru
    _
  // Predicated region
  $region26: #{password_rnn_forward.1} parent=0 // pred_check
    _
  $region27: #{password_rnn_forward.1} parent=0 // pred_check_branch
    %28 = sbr.rel (0) target = $region29
  $region28: #{password_rnn_forward.1} parent=0 // pred_region
    _
  $region29: #{password_rnn_forward.1} parent=0 // pred_fallthru
    _
  // Predicated region
  $region30: #{password_rnn_forward.1} parent=0 // pred_check
    _
  $region31: #{password_rnn_forward.1} parent=0 // pred_check_branch
    %30 = sbr.rel (0) target = $region33
  $region32: #{password_rnn_forward.1} parent=0 // pred_region
    _
  $region33: #{password_rnn_forward.1} parent=0 // pred_fallthru
    _
  %v32 = vld [vmem:[%s0] sm:$0xff]
  %v33 = vld [vmem:[%s0 + $0x8] sm:$0xff]
  %v34 = vld [vmem:[%s0 + $0x10] sm:$0xff]
  %v35 = vld [vmem:[%s0 + $0x18] sm:$0xff]
  %v36 = vld [vmem:[%s0 + $0x20] sm:$0xff]
  %v37 = vld [vmem:[%s0 + $0x28] sm:$0xff]
  %v38 = vld [vmem:[%s0 + $0x30] sm:$0xff]
  %v39 = vld [vmem:[%s0 + $0x38] sm:$0xff]
  %v40 = vlaneseq
  %v41 = vand.u32 %v40, 127
  %42 = vset.pattern.permute.xlu0 0
  %43 = vperm.xlu0 %42, %v32
  %v44 = vpop.permute.xlu0 %43
  %45 = vset.pattern.permute.xlu0 0
  %46 = vperm.xlu0 %45, %v33
  %v47 = vpop.permute.xlu0 %46
  %48 = vset.pattern.permute.xlu0 0
  %49 = vperm.xlu0 %48, %v34
  %v50 = vpop.permute.xlu0 %49
  %51 = vset.pattern.permute.xlu0 0
  %52 = vperm.xlu0 %51, %v35
  %v53 = vpop.permute.xlu0 %52
  %54 = vset.pattern.permute.xlu0 0
  %55 = vperm.xlu0 %54, %v36
  %v56 = vpop.permute.xlu0 %55
  %57 = vset.pattern.permute.xlu0 0
  %58 = vperm.xlu0 %57, %v37
  %v59 = vpop.permute.xlu0 %58
  %60 = vset.pattern.permute.xlu0 0
  %61 = vperm.xlu0 %60, %v38
  %v62 = vpop.permute.xlu0 %61
  %63 = vset.pattern.permute.xlu0 0
  %64 = vperm.xlu0 %63, %v39
  %v65 = vpop.permute.xlu0 %64
  %vm66 = vcmp.eq.s32.totalorder %v44, %v41
  %vm67 = vcmp.eq.s32.totalorder %v47, %v41
  %vm68 = vcmp.eq.s32.totalorder %v50, %v41
  %vm69 = vcmp.eq.s32.totalorder %v53, %v41
  %vm70 = vcmp.eq.s32.totalorder %v56, %v41
  %vm71 = vcmp.eq.s32.totalorder %v59, %v41
  %vm72 = vcmp.eq.s32.totalorder %v62, %v41
  %vm73 = vcmp.eq.s32.totalorder %v65, %v41
  %v74 = vsel %vm66, 1, 0
  %v75 = vsel %vm67, 1, 0
  %v76 = vsel %vm68, 1, 0
  %v77 = vsel %vm69, 1, 0
  %v78 = vsel %vm70, 1, 0
  %v79 = vsel %vm71, 1, 0
  %v80 = vsel %vm72, 1, 0
  %v81 = vsel %vm73, 1, 0
  %v82 = vcvt.s32.f32 %v74
  %v83 = vcvt.s32.f32 %v75
  %v84 = vcvt.s32.f32 %v76
  %v85 = vcvt.s32.f32 %v77
  %v86 = vcvt.s32.f32 %v78
  %v87 = vcvt.s32.f32 %v79
  %v88 = vcvt.s32.f32 %v80
  %v89 = vcvt.s32.f32 %v81
  %v90 = vld [vmem:[%s1] sm:$0xff]
  %v91 = vld [vmem:[%s1 + $0x8] sm:$0xff]
  %v92 = vld [vmem:[%s1 + $0x10] sm:$0xff]
  %v93 = vld [vmem:[%s1 + $0x18] sm:$0xff]
  %vm94 = vcmask 261120
  %v96 = vsel %vm94, %v82, 0
  %v99 = vsel %vm94, %v83, 0
  %v102 = vsel %vm94, %v84, 0
  %v105 = vsel %vm94, %v85, 0
  %v108 = vsel %vm94, %v86, 0
  %v111 = vsel %vm94, %v87, 0
  %v114 = vsel %vm94, %v88, 0
  %v117 = vsel %vm94, %v89, 0
  %119 = vmatpush.msra.mxu0 0.0
  %120 = vmatpush.msra.mxu0 0.0
  %121 = vmatpush.msra.mxu0 0.0
  %122 = vmatpush.msra.mxu0 0.0
  %123 = vmatpush.msra.mxu0 0.0
  %124 = vmatpush.msra.mxu0 0.0
  %125 = vmatpush.msra.mxu0 0.0
  %126 = vmatpush.msra.mxu0 0.0
  %127 = vmatpush.msra.mxu0 0.0
  %128 = vmatpush.msra.mxu0 0.0
  %129 = vmatpush.msra.mxu0 0.0
  %130 = vmatpush.msra.mxu0 0.0
  %131 = vmatpush.msra.mxu0 %v93
  %132 = vmatpush.msra.mxu0 %v92
  %133 = vmatpush.msra.mxu0 %v91
  %134 = vmatpush.msra.mxu0 %v90
  %135 = vmatmul.f32.gmra.mxu0 %v96
  %v136 = vpop.f32.mrf.mxu0
  %v137 = vadd.f32 0.0, %v136
  %138 = vmatmul.f32.gmra.mxu0 %v99
  %v139 = vpop.f32.mrf.mxu0
  %v140 = vadd.f32 0.0, %v139
  %141 = vmatmul.f32.gmra.mxu0 %v102
  %v142 = vpop.f32.mrf.mxu0
  %v143 = vadd.f32 0.0, %v142
  %144 = vmatmul.f32.gmra.mxu0 %v105
  %v145 = vpop.f32.mrf.mxu0
  %v146 = vadd.f32 0.0, %v145
  %147 = vmatmul.f32.gmra.mxu0 %v108
  %v148 = vpop.f32.mrf.mxu0
  %v149 = vadd.f32 0.0, %v148
  %150 = vmatmul.f32.gmra.mxu0 %v111
  %v151 = vpop.f32.mrf.mxu0
  %v152 = vadd.f32 0.0, %v151
  %153 = vmatmul.f32.gmra.mxu0 %v114
  %v154 = vpop.f32.mrf.mxu0
  %v155 = vadd.f32 0.0, %v154
  %156 = vmatmul.f32.gmra.mxu0 %v117
  %v157 = vpop.f32.mrf.mxu0
  %v158 = vadd.f32 0.0, %v157
  %159 = vdwg.mxu0
  %v160 = vld [vmem:[%s2] sm:$0xf]
  %v161 = vld [vmem:[%s2 + $0x4] sm:$0xf]
  %v162 = vld [vmem:[%s2 + $0x8] sm:$0xf]
  %v163 = vld [vmem:[%s2 + $0xc] sm:$0xf]
  %v164 = vld [vmem:[%s3] sm:$0xf]
  %v165 = vld [vmem:[%s3 + $0x4] sm:$0xf]
  %v166 = vld [vmem:[%s3 + $0x8] sm:$0xf]
  %v167 = vld [vmem:[%s3 + $0xc] sm:$0xf]
  %v168 = vld [vmem:[%s4] sm:$0xf]
  %v169 = vld [vmem:[%s4 + $0x4] sm:$0xf]
  %v170 = vld [vmem:[%s4 + $0x8] sm:$0xf]
  %v171 = vld [vmem:[%s4 + $0xc] sm:$0xf]
  %v172 = vld [vmem:[%s5] sm:$0x1]
  %v174 = vperm.slane %v172, 0
  %v180 = vunpack.c.l.b16 %v160
  %v181 = vunpack.c.l.b16 %v161
  %v182 = vunpack.c.l.b16 %v162
  %v183 = vunpack.c.l.b16 %v163
  %v184 = vpack.c.b16 %v181, %v180
  %v185 = vpack.c.b16 %v183, %v182
  %v189 = vsel %vm94, 0, 0
  %191 = vmatpush.bf16.msra.mxu0 0
  %192 = vmatpush.bf16.msra.mxu0 0
  %193 = vmatpush.bf16.msra.mxu0 0
  %194 = vmatpush.bf16.msra.mxu0 0
  %195 = vmatpush.bf16.msra.mxu0 0
  %196 = vmatpush.bf16.msra.mxu0 0
  %197 = vmatpush.bf16.msra.mxu0 %v185
  %198 = vmatpush.bf16.msra.mxu0 %v184
  %199 = vmatmul.bf16.gmra.mxu0 %v189
  %v200 = vpop.f32.mrf.mxu0
  %v201 = vadd.f32 0.0, %v200
  %v202 = vpop.f32.mrf.mxu0
  %203 = vdwg.mxu0
  %v204 = vadd.f32 %v137, %v201
  %v205 = vxor.u32 %v204, 2147483648
  %v206 = vmul.f32 %v205, 1.442695
  %v207 = vpow.pop %v206
  %v208 = vadd.f32 %v207, 1.0
  %v209 = vrcp.pop %v208
  %v210 = vmul.f32 %v208, %v209
  %v211 = vsub.f32 1.0, %v210
  %v212 = vmul.f32 %v209, %v211
  %v213 = vadd.f32 %v209, %v212
  %vm214 = vweird.f32 %v208
  %vm215 = vweird.f32 %v209
  %vm216 = vmor %vm214, %vm215
  %v217 = vsel %vm216, %v209, %v213
  %v218 = vand.u32 2147483647, %v208
  %vm219 = vcmp.eq.f32.partialorder %v218, 8.507059e+37
  %v220 = vand.u32 %v208, 2147483648
  %v221 = vor.u32 1.1754944e-38, %v220
  %v222 = vsel %vm219, %v221, %v217
  %v223 = vmul.f32 1.0, %v222
  %v224 = vtanh.pop %v204
  %v225 = vmul.f32 %v223, 0.0
  %227 = vrot.lane.b32.xlu0 %v224, 32
  %v228 = vpop.permute.xlu0 %227
  %v230 = vmul.f32 %v223, %v228
  %232 = vrot.lane.b32.xlu0 %v230, 32
  %v233 = vpop.permute.xlu0 %232
  %v235 = vadd.f32 %v225, %v233
  %v236 = vtanh.pop %v235
  %238 = vrot.lane.b32.xlu0 %v236, 32
  %v239 = vpop.permute.xlu0 %238
  %v241 = vmul.f32 %v223, %v239
  %v242 = vpack.c.bf16 %v241, %v241
  %v247 = vunpack.c.l.b16 %v164
  %v248 = vunpack.c.l.b16 %v165
  %v249 = vunpack.c.l.b16 %v166
  %v250 = vunpack.c.l.b16 %v167
  %v251 = vpack.c.b16 %v248, %v247
  %v252 = vpack.c.b16 %v250, %v249
  %255 = vmatpush.bf16.msra.mxu0 0
  %256 = vmatpush.bf16.msra.mxu0 0
  %257 = vmatpush.bf16.msra.mxu0 0
  %258 = vmatpush.bf16.msra.mxu0 0
  %259 = vmatpush.bf16.msra.mxu0 0
  %260 = vmatpush.bf16.msra.mxu0 0
  %261 = vmatpush.bf16.msra.mxu0 %v252
  %262 = vmatpush.bf16.msra.mxu0 %v251
  %263 = vmatmul.bf16.gmra.mxu0 %v189
  %v264 = vpop.f32.mrf.mxu0
  %v265 = vadd.f32 0.0, %v264
  %v266 = vpop.f32.mrf.mxu0
  %267 = vdwg.mxu0
  %269 = vrot.lane.b32.xlu0 %v242, 64
  %v270 = vpop.permute.xlu0 %269
  %v275 = vunpack.c.l.b16 %v168
  %v276 = vunpack.c.l.b16 %v169
  %v277 = vunpack.c.l.b16 %v170
  %v278 = vunpack.c.l.b16 %v171
  %v279 = vpack.c.b16 %v276, %v275
  %v280 = vpack.c.b16 %v278, %v277
  %v284 = vsel %vm94, %v270, 0
  %286 = vmatpush.bf16.msra.mxu0 0
  %287 = vmatpush.bf16.msra.mxu0 0
  %288 = vmatpush.bf16.msra.mxu0 0
  %289 = vmatpush.bf16.msra.mxu0 0
  %290 = vmatpush.bf16.msra.mxu0 0
  %291 = vmatpush.bf16.msra.mxu0 0
  %292 = vmatpush.bf16.msra.mxu0 %v280
  %293 = vmatpush.bf16.msra.mxu0 %v279
  %294 = vmatmul.bf16.gmra.mxu0 %v284
  %v295 = vpop.f32.mrf.mxu0
  %v296 = vadd.f32 %v265, %v295
  %v297 = vpop.f32.mrf.mxu0
  %298 = vdwg.mxu0
  %v299 = vadd.f32 %v296, %v174
  %v300 = vxor.u32 %v299, 2147483648
  %v301 = vmul.f32 %v300, 1.442695
  %v302 = vpow.pop %v301
  %v303 = vadd.f32 %v302, 1.0
  %v304 = vrcp.pop %v303
  %v305 = vmul.f32 %v303, %v304
  %v306 = vsub.f32 1.0, %v305
  %v307 = vmul.f32 %v304, %v306
  %v308 = vadd.f32 %v304, %v307
  %vm309 = vweird.f32 %v303
  %vm310 = vweird.f32 %v304
  %vm311 = vmor %vm309, %vm310
  %v312 = vsel %vm311, %v304, %v308
  %v313 = vand.u32 2147483647, %v303
  %vm314 = vcmp.eq.f32.partialorder %v313, 8.507059e+37
  %v315 = vand.u32 %v303, 2147483648
  %v316 = vor.u32 1.1754944e-38, %v315
  %v317 = vsel %vm314, %v316, %v312
  %v318 = vmul.f32 1.0, %v317
  %v319 = vtanh.pop %v299
  %v320 = vmul.f32 %v318, 0.0
  %322 = vrot.lane.b32.xlu0 %v319, 32
  %v323 = vpop.permute.xlu0 %322
  %v325 = vmul.f32 %v318, %v323
  %327 = vrot.lane.b32.xlu0 %v325, 32
  %v328 = vpop.permute.xlu0 %327
  %v330 = vadd.f32 %v320, %v328
  %v331 = vtanh.pop %v330
  %333 = vrot.lane.b32.xlu0 %v331, 32
  %v334 = vpop.permute.xlu0 %333
  %v336 = vmul.f32 %v318, %v334
  %337 = vmatpush.bf16.msra.mxu0 0
  %338 = vmatpush.bf16.msra.mxu0 0
  %339 = vmatpush.bf16.msra.mxu0 0
  %340 = vmatpush.bf16.msra.mxu0 0
  %341 = vmatpush.bf16.msra.mxu0 0
  %342 = vmatpush.bf16.msra.mxu0 0
  %343 = vmatpush.bf16.msra.mxu0 %v185
  %344 = vmatpush.bf16.msra.mxu0 %v184
  %345 = vmatmul.bf16.gmra.mxu0 %v284
  %v346 = vpop.f32.mrf.mxu0
  %v347 = vadd.f32 0.0, %v346
  %v348 = vpop.f32.mrf.mxu0
  %349 = vdwg.mxu0
  %v350 = vadd.f32 %v140, %v347
  %v351 = vxor.u32 %v350, 2147483648
  %v352 = vmul.f32 %v351, 1.442695
  %v353 = vpow.pop %v352
  %v354 = vadd.f32 %v353, 1.0
  %v355 = vrcp.pop %v354
  %v356 = vmul.f32 %v354, %v355
  %v357 = vsub.f32 1.0, %v356
  %v358 = vmul.f32 %v355, %v357
  %v359 = vadd.f32 %v355, %v358
  %vm360 = vweird.f32 %v354
  %vm361 = vweird.f32 %v355
  %vm362 = vmor %vm360, %vm361
  %v363 = vsel %vm362, %v355, %v359
  %v364 = vand.u32 2147483647, %v354
  %vm365 = vcmp.eq.f32.partialorder %v364, 8.507059e+37
  %v366 = vand.u32 %v354, 2147483648
  %v367 = vor.u32 1.1754944e-38, %v366
  %v368 = vsel %vm365, %v367, %v363
  %v369 = vmul.f32 1.0, %v368
  %v370 = vtanh.pop %v350
  %v371 = vmul.f32 %v369, %v235
  %373 = vrot.lane.b32.xlu0 %v370, 32
  %v374 = vpop.permute.xlu0 %373
  %v376 = vmul.f32 %v369, %v374
  %378 = vrot.lane.b32.xlu0 %v376, 32
  %v379 = vpop.permute.xlu0 %378
  %v381 = vadd.f32 %v371, %v379
  %v382 = vtanh.pop %v381
  %384 = vrot.lane.b32.xlu0 %v382, 32
  %v385 = vpop.permute.xlu0 %384
  %v387 = vmul.f32 %v369, %v385
  %v388 = vpack.c.bf16 %v387, %v387
  %v389 = vpack.c.bf16 %v336, %v336
  %391 = vrot.lane.b32.xlu0 %v389, 64
  %v392 = vpop.permute.xlu0 %391
  %v394 = vsel %vm94, %v392, 0
  %396 = vmatpush.bf16.msra.mxu0 0
  %397 = vmatpush.bf16.msra.mxu0 0
  %398 = vmatpush.bf16.msra.mxu0 0
  %399 = vmatpush.bf16.msra.mxu0 0
  %400 = vmatpush.bf16.msra.mxu0 0
  %401 = vmatpush.bf16.msra.mxu0 0
  %402 = vmatpush.bf16.msra.mxu0 %v252
  %403 = vmatpush.bf16.msra.mxu0 %v251
  %404 = vmatmul.bf16.gmra.mxu0 %v394
  %v405 = vpop.f32.mrf.mxu0
  %v406 = vadd.f32 0.0, %v405
  %v407 = vpop.f32.mrf.mxu0
  %408 = vdwg.mxu0
  %410 = vrot.lane.b32.xlu0 %v388, 64
  %v411 = vpop.permute.xlu0 %410
  %v413 = vsel %vm94, %v411, 0
  %415 = vmatpush.bf16.msra.mxu0 0
  %416 = vmatpush.bf16.msra.mxu0 0
  %417 = vmatpush.bf16.msra.mxu0 0
  %418 = vmatpush.bf16.msra.mxu0 0
  %419 = vmatpush.bf16.msra.mxu0 0
  %420 = vmatpush.bf16.msra.mxu0 0
  %421 = vmatpush.bf16.msra.mxu0 %v280
  %422 = vmatpush.bf16.msra.mxu0 %v279
  %423 = vmatmul.bf16.gmra.mxu0 %v413
  %v424 = vpop.f32.mrf.mxu0
  %v425 = vadd.f32 %v406, %v424
  %v426 = vpop.f32.mrf.mxu0
  %427 = vdwg.mxu0
  %v428 = vadd.f32 %v425, %v174
  %v429 = vxor.u32 %v428, 2147483648
  %v430 = vmul.f32 %v429, 1.442695
  %v431 = vpow.pop %v430
  %v432 = vadd.f32 %v431, 1.0
  %v433 = vrcp.pop %v432
  %v434 = vmul.f32 %v432, %v433
  %v435 = vsub.f32 1.0, %v434
  %v436 = vmul.f32 %v433, %v435
  %v437 = vadd.f32 %v433, %v436
  %vm438 = vweird.f32 %v432
  %vm439 = vweird.f32 %v433
  %vm440 = vmor %vm438, %vm439
  %v441 = vsel %vm440, %v433, %v437
  %v442 = vand.u32 2147483647, %v432
  %vm443 = vcmp.eq.f32.partialorder %v442, 8.507059e+37
  %v444 = vand.u32 %v432, 2147483648
  %v445 = vor.u32 1.1754944e-38, %v444
  %v446 = vsel %vm443, %v445, %v441
  %v447 = vmul.f32 1.0, %v446
  %v448 = vtanh.pop %v428
  %v449 = vmul.f32 %v447, %v330
  %451 = vrot.lane.b32.xlu0 %v448, 32
  %v452 = vpop.permute.xlu0 %451
  %v454 = vmul.f32 %v447, %v452
  %456 = vrot.lane.b32.xlu0 %v454, 32
  %v457 = vpop.permute.xlu0 %456
  %v459 = vadd.f32 %v449, %v457
  %v460 = vtanh.pop %v459
  %462 = vrot.lane.b32.xlu0 %v460, 32
  %v463 = vpop.permute.xlu0 %462
  %v465 = vmul.f32 %v447, %v463
  %466 = vmatpush.bf16.msra.mxu0 0
  %467 = vmatpush.bf16.msra.mxu0 0
  %468 = vmatpush.bf16.msra.mxu0 0
  %469 = vmatpush.bf16.msra.mxu0 0
  %470 = vmatpush.bf16.msra.mxu0 0
  %471 = vmatpush.bf16.msra.mxu0 0
  %472 = vmatpush.bf16.msra.mxu0 %v185
  %473 = vmatpush.bf16.msra.mxu0 %v184
  %474 = vmatmul.bf16.gmra.mxu0 %v413
  %v475 = vpop.f32.mrf.mxu0
  %v476 = vadd.f32 0.0, %v475
  %v477 = vpop.f32.mrf.mxu0
  %478 = vdwg.mxu0
  %v479 = vadd.f32 %v143, %v476
  %v480 = vxor.u32 %v479, 2147483648
  %v481 = vmul.f32 %v480, 1.442695
  %v482 = vpow.pop %v481
  %v483 = vadd.f32 %v482, 1.0
  %v484 = vrcp.pop %v483
  %v485 = vmul.f32 %v483, %v484
  %v486 = vsub.f32 1.0, %v485
  %v487 = vmul.f32 %v484, %v486
  %v488 = vadd.f32 %v484, %v487
  %vm489 = vweird.f32 %v483
  %vm490 = vweird.f32 %v484
  %vm491 = vmor %vm489, %vm490
  %v492 = vsel %vm491, %v484, %v488
  %v493 = vand.u32 2147483647, %v483
  %vm494 = vcmp.eq.f32.partialorder %v493, 8.507059e+37
  %v495 = vand.u32 %v483, 2147483648
  %v496 = vor.u32 1.1754944e-38, %v495
  %v497 = vsel %vm494, %v496, %v492
  %v498 = vmul.f32 1.0, %v497
  %v499 = vtanh.pop %v479
  %v500 = vmul.f32 %v498, %v381
  %502 = vrot.lane.b32.xlu0 %v499, 32
  %v503 = vpop.permute.xlu0 %502
  %v505 = vmul.f32 %v498, %v503
  %507 = vrot.lane.b32.xlu0 %v505, 32
  %v508 = vpop.permute.xlu0 %507
  %v510 = vadd.f32 %v500, %v508
  %v511 = vtanh.pop %v510
  %513 = vrot.lane.b32.xlu0 %v511, 32
  %v514 = vpop.permute.xlu0 %513
  %v516 = vmul.f32 %v498, %v514
  %v517 = vpack.c.bf16 %v516, %v516
  %v518 = vpack.c.bf16 %v465, %v465
  %520 = vrot.lane.b32.xlu0 %v518, 64
  %v521 = vpop.permute.xlu0 %520
  %v523 = vsel %vm94, %v521, 0
  %525 = vmatpush.bf16.msra.mxu0 0
  %526 = vmatpush.bf16.msra.mxu0 0
  %527 = vmatpush.bf16.msra.mxu0 0
  %528 = vmatpush.bf16.msra.mxu0 0
  %529 = vmatpush.bf16.msra.mxu0 0
  %530 = vmatpush.bf16.msra.mxu0 0
  %531 = vmatpush.bf16.msra.mxu0 %v252
  %532 = vmatpush.bf16.msra.mxu0 %v251
  %533 = vmatmul.bf16.gmra.mxu0 %v523
  %v534 = vpop.f32.mrf.mxu0
  %v535 = vadd.f32 0.0, %v534
  %v536 = vpop.f32.mrf.mxu0
  %537 = vdwg.mxu0
  %539 = vrot.lane.b32.xlu0 %v517, 64
  %v540 = vpop.permute.xlu0 %539
  %v542 = vsel %vm94, %v540, 0
  %544 = vmatpush.bf16.msra.mxu0 0
  %545 = vmatpush.bf16.msra.mxu0 0
  %546 = vmatpush.bf16.msra.mxu0 0
  %547 = vmatpush.bf16.msra.mxu0 0
  %548 = vmatpush.bf16.msra.mxu0 0
  %549 = vmatpush.bf16.msra.mxu0 0
  %550 = vmatpush.bf16.msra.mxu0 %v280
  %551 = vmatpush.bf16.msra.mxu0 %v279
  %552 = vmatmul.bf16.gmra.mxu0 %v542
  %v553 = vpop.f32.mrf.mxu0
  %v554 = vadd.f32 %v535, %v553
  %v555 = vpop.f32.mrf.mxu0
  %556 = vdwg.mxu0
  %v557 = vadd.f32 %v554, %v174
  %v558 = vxor.u32 %v557, 2147483648
  %v559 = vmul.f32 %v558, 1.442695
  %v560 = vpow.pop %v559
  %v561 = vadd.f32 %v560, 1.0
  %v562 = vrcp.pop %v561
  %v563 = vmul.f32 %v561, %v562
  %v564 = vsub.f32 1.0, %v563
  %v565 = vmul.f32 %v562, %v564
  %v566 = vadd.f32 %v562, %v565
  %vm567 = vweird.f32 %v561
  %vm568 = vweird.f32 %v562
  %vm569 = vmor %vm567, %vm568
  %v570 = vsel %vm569, %v562, %v566
  %v571 = vand.u32 2147483647, %v561
  %vm572 = vcmp.eq.f32.partialorder %v571, 8.507059e+37
  %v573 = vand.u32 %v561, 2147483648
  %v574 = vor.u32 1.1754944e-38, %v573
  %v575 = vsel %vm572, %v574, %v570
  %v576 = vmul.f32 1.0, %v575
  %v577 = vtanh.pop %v557
  %v578 = vmul.f32 %v576, %v459
  %580 = vrot.lane.b32.xlu0 %v577, 32
  %v581 = vpop.permute.xlu0 %580
  %v583 = vmul.f32 %v576, %v581
  %585 = vrot.lane.b32.xlu0 %v583, 32
  %v586 = vpop.permute.xlu0 %585
  %v588 = vadd.f32 %v578, %v586
  %v589 = vtanh.pop %v588
  %591 = vrot.lane.b32.xlu0 %v589, 32
  %v592 = vpop.permute.xlu0 %591
  %v594 = vmul.f32 %v576, %v592
  %595 = vmatpush.bf16.msra.mxu0 0
  %596 = vmatpush.bf16.msra.mxu0 0
  %597 = vmatpush.bf16.msra.mxu0 0
  %598 = vmatpush.bf16.msra.mxu0 0
  %599 = vmatpush.bf16.msra.mxu0 0
  %600 = vmatpush.bf16.msra.mxu0 0
  %601 = vmatpush.bf16.msra.mxu0 %v185
  %602 = vmatpush.bf16.msra.mxu0 %v184
  %603 = vmatmul.bf16.gmra.mxu0 %v542
  %v604 = vpop.f32.mrf.mxu0
  %v605 = vadd.f32 0.0, %v604
  %v606 = vpop.f32.mrf.mxu0
  %607 = vdwg.mxu0
  %v608 = vadd.f32 %v146, %v605
  %v609 = vxor.u32 %v608, 2147483648
  %v610 = vmul.f32 %v609, 1.442695
  %v611 = vpow.pop %v610
  %v612 = vadd.f32 %v611, 1.0
  %v613 = vrcp.pop %v612
  %v614 = vmul.f32 %v612, %v613
  %v615 = vsub.f32 1.0, %v614
  %v616 = vmul.f32 %v613, %v615
  %v617 = vadd.f32 %v613, %v616
  %vm618 = vweird.f32 %v612
  %vm619 = vweird.f32 %v613
  %vm620 = vmor %vm618, %vm619
  %v621 = vsel %vm620, %v613, %v617
  %v622 = vand.u32 2147483647, %v612
  %vm623 = vcmp.eq.f32.partialorder %v622, 8.507059e+37
  %v624 = vand.u32 %v612, 2147483648
  %v625 = vor.u32 1.1754944e-38, %v624
  %v626 = vsel %vm623, %v625, %v621
  %v627 = vmul.f32 1.0, %v626
  %v628 = vtanh.pop %v608
  %v629 = vmul.f32 %v627, %v510
  %631 = vrot.lane.b32.xlu0 %v628, 32
  %v632 = vpop.permute.xlu0 %631
  %v634 = vmul.f32 %v627, %v632
  %636 = vrot.lane.b32.xlu0 %v634, 32
  %v637 = vpop.permute.xlu0 %636
  %v639 = vadd.f32 %v629, %v637
  %v640 = vtanh.pop %v639
  %642 = vrot.lane.b32.xlu0 %v640, 32
  %v643 = vpop.permute.xlu0 %642
  %v645 = vmul.f32 %v627, %v643
  %v646 = vpack.c.bf16 %v645, %v645
  %v647 = vpack.c.bf16 %v594, %v594
  %649 = vrot.lane.b32.xlu0 %v647, 64
  %v650 = vpop.permute.xlu0 %649
  %v652 = vsel %vm94, %v650, 0
  %654 = vmatpush.bf16.msra.mxu0 0
  %655 = vmatpush.bf16.msra.mxu0 0
  %656 = vmatpush.bf16.msra.mxu0 0
  %657 = vmatpush.bf16.msra.mxu0 0
  %658 = vmatpush.bf16.msra.mxu0 0
  %659 = vmatpush.bf16.msra.mxu0 0
  %660 = vmatpush.bf16.msra.mxu0 %v252
  %661 = vmatpush.bf16.msra.mxu0 %v251
  %662 = vmatmul.bf16.gmra.mxu0 %v652
  %v663 = vpop.f32.mrf.mxu0
  %v664 = vadd.f32 0.0, %v663
  %v665 = vpop.f32.mrf.mxu0
  %666 = vdwg.mxu0
  %668 = vrot.lane.b32.xlu0 %v646, 64
  %v669 = vpop.permute.xlu0 %668
  %v671 = vsel %vm94, %v669, 0
  %673 = vmatpush.bf16.msra.mxu0 0
  %674 = vmatpush.bf16.msra.mxu0 0
  %675 = vmatpush.bf16.msra.mxu0 0
  %676 = vmatpush.bf16.msra.mxu0 0
  %677 = vmatpush.bf16.msra.mxu0 0
  %678 = vmatpush.bf16.msra.mxu0 0
  %679 = vmatpush.bf16.msra.mxu0 %v280
  %680 = vmatpush.bf16.msra.mxu0 %v279
  %681 = vmatmul.bf16.gmra.mxu0 %v671
  %v682 = vpop.f32.mrf.mxu0
  %v683 = vadd.f32 %v664, %v682
  %v684 = vpop.f32.mrf.mxu0
  %685 = vdwg.mxu0
  %v686 = vadd.f32 %v683, %v174
  %v687 = vxor.u32 %v686, 2147483648
  %v688 = vmul.f32 %v687, 1.442695
  %v689 = vpow.pop %v688
  %v690 = vadd.f32 %v689, 1.0
  %v691 = vrcp.pop %v690
  %v692 = vmul.f32 %v690, %v691
  %v693 = vsub.f32 1.0, %v692
  %v694 = vmul.f32 %v691, %v693
  %v695 = vadd.f32 %v691, %v694
  %vm696 = vweird.f32 %v690
  %vm697 = vweird.f32 %v691
  %vm698 = vmor %vm696, %vm697
  %v699 = vsel %vm698, %v691, %v695
  %v700 = vand.u32 2147483647, %v690
  %vm701 = vcmp.eq.f32.partialorder %v700, 8.507059e+37
  %v702 = vand.u32 %v690, 2147483648
  %v703 = vor.u32 1.1754944e-38, %v702
  %v704 = vsel %vm701, %v703, %v699
  %v705 = vmul.f32 1.0, %v704
  %v706 = vtanh.pop %v686
  %v707 = vmul.f32 %v705, %v588
  %709 = vrot.lane.b32.xlu0 %v706, 32
  %v710 = vpop.permute.xlu0 %709
  %v712 = vmul.f32 %v705, %v710
  %714 = vrot.lane.b32.xlu0 %v712, 32
  %v715 = vpop.permute.xlu0 %714
  %v717 = vadd.f32 %v707, %v715
  %v718 = vtanh.pop %v717
  %720 = vrot.lane.b32.xlu0 %v718, 32
  %v721 = vpop.permute.xlu0 %720
  %v723 = vmul.f32 %v705, %v721
  %724 = vmatpush.bf16.msra.mxu0 0
  %725 = vmatpush.bf16.msra.mxu0 0
  %726 = vmatpush.bf16.msra.mxu0 0
  %727 = vmatpush.bf16.msra.mxu0 0
  %728 = vmatpush.bf16.msra.mxu0 0
  %729 = vmatpush.bf16.msra.mxu0 0
  %730 = vmatpush.bf16.msra.mxu0 %v185
  %731 = vmatpush.bf16.msra.mxu0 %v184
  %732 = vmatmul.bf16.gmra.mxu0 %v671
  %v733 = vpop.f32.mrf.mxu0
  %v734 = vadd.f32 0.0, %v733
  %v735 = vpop.f32.mrf.mxu0
  %736 = vdwg.mxu0
  %v737 = vadd.f32 %v149, %v734
  %v738 = vxor.u32 %v737, 2147483648
  %v739 = vmul.f32 %v738, 1.442695
  %v740 = vpow.pop %v739
  %v741 = vadd.f32 %v740, 1.0
  %v742 = vrcp.pop %v741
  %v743 = vmul.f32 %v741, %v742
  %v744 = vsub.f32 1.0, %v743
  %v745 = vmul.f32 %v742, %v744
  %v746 = vadd.f32 %v742, %v745
  %vm747 = vweird.f32 %v741
  %vm748 = vweird.f32 %v742
  %vm749 = vmor %vm747, %vm748
  %v750 = vsel %vm749, %v742, %v746
  %v751 = vand.u32 2147483647, %v741
  %vm752 = vcmp.eq.f32.partialorder %v751, 8.507059e+37
  %v753 = vand.u32 %v741, 2147483648
  %v754 = vor.u32 1.1754944e-38, %v753
  %v755 = vsel %vm752, %v754, %v750
  %v756 = vmul.f32 1.0, %v755
  %v757 = vtanh.pop %v737
  %v758 = vmul.f32 %v756, %v639
  %760 = vrot.lane.b32.xlu0 %v757, 32
  %v761 = vpop.permute.xlu0 %760
  %v763 = vmul.f32 %v756, %v761
  %765 = vrot.lane.b32.xlu0 %v763, 32
  %v766 = vpop.permute.xlu0 %765
  %v768 = vadd.f32 %v758, %v766
  %v769 = vtanh.pop %v768
  %771 = vrot.lane.b32.xlu0 %v769, 32
  %v772 = vpop.permute.xlu0 %771
  %v774 = vmul.f32 %v756, %v772
  %v775 = vpack.c.bf16 %v774, %v774
  %v776 = vpack.c.bf16 %v723, %v723
  %778 = vrot.lane.b32.xlu0 %v776, 64
  %v779 = vpop.permute.xlu0 %778
  %v781 = vsel %vm94, %v779, 0
  %783 = vmatpush.bf16.msra.mxu0 0
  %784 = vmatpush.bf16.msra.mxu0 0
  %785 = vmatpush.bf16.msra.mxu0 0
  %786 = vmatpush.bf16.msra.mxu0 0
  %787 = vmatpush.bf16.msra.mxu0 0
  %788 = vmatpush.bf16.msra.mxu0 0
  %789 = vmatpush.bf16.msra.mxu0 %v252
  %790 = vmatpush.bf16.msra.mxu0 %v251
  %791 = vmatmul.bf16.gmra.mxu0 %v781
  %v792 = vpop.f32.mrf.mxu0
  %v793 = vadd.f32 0.0, %v792
  %v794 = vpop.f32.mrf.mxu0
  %795 = vdwg.mxu0
  %797 = vrot.lane.b32.xlu0 %v775, 64
  %v798 = vpop.permute.xlu0 %797
  %v800 = vsel %vm94, %v798, 0
  %802 = vmatpush.bf16.msra.mxu0 0
  %803 = vmatpush.bf16.msra.mxu0 0
  %804 = vmatpush.bf16.msra.mxu0 0
  %805 = vmatpush.bf16.msra.mxu0 0
  %806 = vmatpush.bf16.msra.mxu0 0
  %807 = vmatpush.bf16.msra.mxu0 0
  %808 = vmatpush.bf16.msra.mxu0 %v280
  %809 = vmatpush.bf16.msra.mxu0 %v279
  %810 = vmatmul.bf16.gmra.mxu0 %v800
  %v811 = vpop.f32.mrf.mxu0
  %v812 = vadd.f32 %v793, %v811
  %v813 = vpop.f32.mrf.mxu0
  %814 = vdwg.mxu0
  %v815 = vadd.f32 %v812, %v174
  %v816 = vxor.u32 %v815, 2147483648
  %v817 = vmul.f32 %v816, 1.442695
  %v818 = vpow.pop %v817
  %v819 = vadd.f32 %v818, 1.0
  %v820 = vrcp.pop %v819
  %v821 = vmul.f32 %v819, %v820
  %v822 = vsub.f32 1.0, %v821
  %v823 = vmul.f32 %v820, %v822
  %v824 = vadd.f32 %v820, %v823
  %vm825 = vweird.f32 %v819
  %vm826 = vweird.f32 %v820
  %vm827 = vmor %vm825, %vm826
  %v828 = vsel %vm827, %v820, %v824
  %v829 = vand.u32 2147483647, %v819
  %vm830 = vcmp.eq.f32.partialorder %v829, 8.507059e+37
  %v831 = vand.u32 %v819, 2147483648
  %v832 = vor.u32 1.1754944e-38, %v831
  %v833 = vsel %vm830, %v832, %v828
  %v834 = vmul.f32 1.0, %v833
  %v835 = vtanh.pop %v815
  %v836 = vmul.f32 %v834, %v717
  %838 = vrot.lane.b32.xlu0 %v835, 32
  %v839 = vpop.permute.xlu0 %838
  %v841 = vmul.f32 %v834, %v839
  %843 = vrot.lane.b32.xlu0 %v841, 32
  %v844 = vpop.permute.xlu0 %843
  %v846 = vadd.f32 %v836, %v844
  %v847 = vtanh.pop %v846
  %849 = vrot.lane.b32.xlu0 %v847, 32
  %v850 = vpop.permute.xlu0 %849
  %v852 = vmul.f32 %v834, %v850
  %853 = vmatpush.bf16.msra.mxu0 0
  %854 = vmatpush.bf16.msra.mxu0 0
  %855 = vmatpush.bf16.msra.mxu0 0
  %856 = vmatpush.bf16.msra.mxu0 0
  %857 = vmatpush.bf16.msra.mxu0 0
  %858 = vmatpush.bf16.msra.mxu0 0
  %859 = vmatpush.bf16.msra.mxu0 %v185
  %860 = vmatpush.bf16.msra.mxu0 %v184
  %861 = vmatmul.bf16.gmra.mxu0 %v800
  %v862 = vpop.f32.mrf.mxu0
  %v863 = vadd.f32 0.0, %v862
  %v864 = vpop.f32.mrf.mxu0
  %865 = vdwg.mxu0
  %v866 = vadd.f32 %v152, %v863
  %v867 = vxor.u32 %v866, 2147483648
  %v868 = vmul.f32 %v867, 1.442695
  %v869 = vpow.pop %v868
  %v870 = vadd.f32 %v869, 1.0
  %v871 = vrcp.pop %v870
  %v872 = vmul.f32 %v870, %v871
  %v873 = vsub.f32 1.0, %v872
  %v874 = vmul.f32 %v871, %v873
  %v875 = vadd.f32 %v871, %v874
  %vm876 = vweird.f32 %v870
  %vm877 = vweird.f32 %v871
  %vm878 = vmor %vm876, %vm877
  %v879 = vsel %vm878, %v871, %v875
  %v880 = vand.u32 2147483647, %v870
  %vm881 = vcmp.eq.f32.partialorder %v880, 8.507059e+37
  %v882 = vand.u32 %v870, 2147483648
  %v883 = vor.u32 1.1754944e-38, %v882
  %v884 = vsel %vm881, %v883, %v879
  %v885 = vmul.f32 1.0, %v884
  %v886 = vtanh.pop %v866
  %v887 = vmul.f32 %v885, %v768
  %889 = vrot.lane.b32.xlu0 %v886, 32
  %v890 = vpop.permute.xlu0 %889
  %v892 = vmul.f32 %v885, %v890
  %894 = vrot.lane.b32.xlu0 %v892, 32
  %v895 = vpop.permute.xlu0 %894
  %v897 = vadd.f32 %v887, %v895
  %v898 = vtanh.pop %v897
  %900 = vrot.lane.b32.xlu0 %v898, 32
  %v901 = vpop.permute.xlu0 %900
  %v903 = vmul.f32 %v885, %v901
  %v904 = vpack.c.bf16 %v903, %v903
  %v905 = vpack.c.bf16 %v852, %v852
  %907 = vrot.lane.b32.xlu0 %v905, 64
  %v908 = vpop.permute.xlu0 %907
  %v910 = vsel %vm94, %v908, 0
  %912 = vmatpush.bf16.msra.mxu0 0
  %913 = vmatpush.bf16.msra.mxu0 0
  %914 = vmatpush.bf16.msra.mxu0 0
  %915 = vmatpush.bf16.msra.mxu0 0
  %916 = vmatpush.bf16.msra.mxu0 0
  %917 = vmatpush.bf16.msra.mxu0 0
  %918 = vmatpush.bf16.msra.mxu0 %v252
  %919 = vmatpush.bf16.msra.mxu0 %v251
  %920 = vmatmul.bf16.gmra.mxu0 %v910
  %v921 = vpop.f32.mrf.mxu0
  %v922 = vadd.f32 0.0, %v921
  %v923 = vpop.f32.mrf.mxu0
  %924 = vdwg.mxu0
  %926 = vrot.lane.b32.xlu0 %v904, 64
  %v927 = vpop.permute.xlu0 %926
  %v929 = vsel %vm94, %v927, 0
  %931 = vmatpush.bf16.msra.mxu0 0
  %932 = vmatpush.bf16.msra.mxu0 0
  %933 = vmatpush.bf16.msra.mxu0 0
  %934 = vmatpush.bf16.msra.mxu0 0
  %935 = vmatpush.bf16.msra.mxu0 0
  %936 = vmatpush.bf16.msra.mxu0 0
  %937 = vmatpush.bf16.msra.mxu0 %v280
  %938 = vmatpush.bf16.msra.mxu0 %v279
  %939 = vmatmul.bf16.gmra.mxu0 %v929
  %v940 = vpop.f32.mrf.mxu0
  %v941 = vadd.f32 %v922, %v940
  %v942 = vpop.f32.mrf.mxu0
  %943 = vdwg.mxu0
  %v944 = vadd.f32 %v941, %v174
  %v945 = vxor.u32 %v944, 2147483648
  %v946 = vmul.f32 %v945, 1.442695
  %v947 = vpow.pop %v946
  %v948 = vadd.f32 %v947, 1.0
  %v949 = vrcp.pop %v948
  %v950 = vmul.f32 %v948, %v949
  %v951 = vsub.f32 1.0, %v950
  %v952 = vmul.f32 %v949, %v951
  %v953 = vadd.f32 %v949, %v952
  %vm954 = vweird.f32 %v948
  %vm955 = vweird.f32 %v949
  %vm956 = vmor %vm954, %vm955
  %v957 = vsel %vm956, %v949, %v953
  %v958 = vand.u32 2147483647, %v948
  %vm959 = vcmp.eq.f32.partialorder %v958, 8.507059e+37
  %v960 = vand.u32 %v948, 2147483648
  %v961 = vor.u32 1.1754944e-38, %v960
  %v962 = vsel %vm959, %v961, %v957
  %v963 = vmul.f32 1.0, %v962
  %v964 = vtanh.pop %v944
  %v965 = vmul.f32 %v963, %v846
  %967 = vrot.lane.b32.xlu0 %v964, 32
  %v968 = vpop.permute.xlu0 %967
  %v970 = vmul.f32 %v963, %v968
  %972 = vrot.lane.b32.xlu0 %v970, 32
  %v973 = vpop.permute.xlu0 %972
  %v975 = vadd.f32 %v965, %v973
  %v976 = vtanh.pop %v975
  %978 = vrot.lane.b32.xlu0 %v976, 32
  %v979 = vpop.permute.xlu0 %978
  %v981 = vmul.f32 %v963, %v979
  %982 = vmatpush.bf16.msra.mxu0 0
  %983 = vmatpush.bf16.msra.mxu0 0
  %984 = vmatpush.bf16.msra.mxu0 0
  %985 = vmatpush.bf16.msra.mxu0 0
  %986 = vmatpush.bf16.msra.mxu0 0
  %987 = vmatpush.bf16.msra.mxu0 0
  %988 = vmatpush.bf16.msra.mxu0 %v185
  %989 = vmatpush.bf16.msra.mxu0 %v184
  %990 = vmatmul.bf16.gmra.mxu0 %v929
  %v991 = vpop.f32.mrf.mxu0
  %v992 = vadd.f32 0.0, %v991
  %v993 = vpop.f32.mrf.mxu0
  %994 = vdwg.mxu0
  %v995 = vadd.f32 %v155, %v992
  %v996 = vxor.u32 %v995, 2147483648
  %v997 = vmul.f32 %v996, 1.442695
  %v998 = vpow.pop %v997
  %v999 = vadd.f32 %v998, 1.0
  %v1000 = vrcp.pop %v999
  %v1001 = vmul.f32 %v999, %v1000
  %v1002 = vsub.f32 1.0, %v1001
  %v1003 = vmul.f32 %v1000, %v1002
  %v1004 = vadd.f32 %v1000, %v1003
  %vm1005 = vweird.f32 %v999
  %vm1006 = vweird.f32 %v1000
  %vm1007 = vmor %vm1005, %vm1006
  %v1008 = vsel %vm1007, %v1000, %v1004
  %v1009 = vand.u32 2147483647, %v999
  %vm1010 = vcmp.eq.f32.partialorder %v1009, 8.507059e+37
  %v1011 = vand.u32 %v999, 2147483648
  %v1012 = vor.u32 1.1754944e-38, %v1011
  %v1013 = vsel %vm1010, %v1012, %v1008
  %v1014 = vmul.f32 1.0, %v1013
  %v1015 = vtanh.pop %v995
  %v1016 = vmul.f32 %v1014, %v897
  %1018 = vrot.lane.b32.xlu0 %v1015, 32
  %v1019 = vpop.permute.xlu0 %1018
  %v1021 = vmul.f32 %v1014, %v1019
  %1023 = vrot.lane.b32.xlu0 %v1021, 32
  %v1024 = vpop.permute.xlu0 %1023
  %v1026 = vadd.f32 %v1016, %v1024
  %v1027 = vtanh.pop %v1026
  %1029 = vrot.lane.b32.xlu0 %v1027, 32
  %v1030 = vpop.permute.xlu0 %1029
  %v1032 = vmul.f32 %v1014, %v1030
  %v1033 = vpack.c.bf16 %v1032, %v1032
  %v1034 = vpack.c.bf16 %v981, %v981
  %1036 = vrot.lane.b32.xlu0 %v1034, 64
  %v1037 = vpop.permute.xlu0 %1036
  %v1039 = vsel %vm94, %v1037, 0
  %1041 = vmatpush.bf16.msra.mxu0 0
  %1042 = vmatpush.bf16.msra.mxu0 0
  %1043 = vmatpush.bf16.msra.mxu0 0
  %1044 = vmatpush.bf16.msra.mxu0 0
  %1045 = vmatpush.bf16.msra.mxu0 0
  %1046 = vmatpush.bf16.msra.mxu0 0
  %1047 = vmatpush.bf16.msra.mxu0 %v252
  %1048 = vmatpush.bf16.msra.mxu0 %v251
  %1049 = vmatmul.bf16.gmra.mxu0 %v1039
  %v1050 = vpop.f32.mrf.mxu0
  %v1051 = vadd.f32 0.0, %v1050
  %v1052 = vpop.f32.mrf.mxu0
  %1053 = vdwg.mxu0
  %1055 = vrot.lane.b32.xlu0 %v1033, 64
  %v1056 = vpop.permute.xlu0 %1055
  %v1058 = vsel %vm94, %v1056, 0
  %1060 = vmatpush.bf16.msra.mxu0 0
  %1061 = vmatpush.bf16.msra.mxu0 0
  %1062 = vmatpush.bf16.msra.mxu0 0
  %1063 = vmatpush.bf16.msra.mxu0 0
  %1064 = vmatpush.bf16.msra.mxu0 0
  %1065 = vmatpush.bf16.msra.mxu0 0
  %1066 = vmatpush.bf16.msra.mxu0 %v280
  %1067 = vmatpush.bf16.msra.mxu0 %v279
  %1068 = vmatmul.bf16.gmra.mxu0 %v1058
  %v1069 = vpop.f32.mrf.mxu0
  %v1070 = vadd.f32 %v1051, %v1069
  %v1071 = vpop.f32.mrf.mxu0
  %1072 = vdwg.mxu0
  %v1073 = vadd.f32 %v1070, %v174
  %v1074 = vxor.u32 %v1073, 2147483648
  %v1075 = vmul.f32 %v1074, 1.442695
  %v1076 = vpow.pop %v1075
  %v1077 = vadd.f32 %v1076, 1.0
  %v1078 = vrcp.pop %v1077
  %v1079 = vmul.f32 %v1077, %v1078
  %v1080 = vsub.f32 1.0, %v1079
  %v1081 = vmul.f32 %v1078, %v1080
  %v1082 = vadd.f32 %v1078, %v1081
  %vm1083 = vweird.f32 %v1077
  %vm1084 = vweird.f32 %v1078
  %vm1085 = vmor %vm1083, %vm1084
  %v1086 = vsel %vm1085, %v1078, %v1082
  %v1087 = vand.u32 2147483647, %v1077
  %vm1088 = vcmp.eq.f32.partialorder %v1087, 8.507059e+37
  %v1089 = vand.u32 %v1077, 2147483648
  %v1090 = vor.u32 1.1754944e-38, %v1089
  %v1091 = vsel %vm1088, %v1090, %v1086
  %v1092 = vmul.f32 1.0, %v1091
  %v1093 = vtanh.pop %v1073
  %v1094 = vmul.f32 %v1092, %v975
  %1096 = vrot.lane.b32.xlu0 %v1093, 32
  %v1097 = vpop.permute.xlu0 %1096
  %v1099 = vmul.f32 %v1092, %v1097
  %1101 = vrot.lane.b32.xlu0 %v1099, 32
  %v1102 = vpop.permute.xlu0 %1101
  %v1104 = vadd.f32 %v1094, %v1102
  %v1105 = vtanh.pop %v1104
  %1107 = vrot.lane.b32.xlu0 %v1105, 32
  %v1108 = vpop.permute.xlu0 %1107
  %v1110 = vmul.f32 %v1092, %v1108
  %1111 = vmatpush.bf16.msra.mxu0 0
  %1112 = vmatpush.bf16.msra.mxu0 0
  %1113 = vmatpush.bf16.msra.mxu0 0
  %1114 = vmatpush.bf16.msra.mxu0 0
  %1115 = vmatpush.bf16.msra.mxu0 0
  %1116 = vmatpush.bf16.msra.mxu0 0
  %1117 = vmatpush.bf16.msra.mxu0 %v185
  %1118 = vmatpush.bf16.msra.mxu0 %v184
  %1119 = vmatmul.bf16.gmra.mxu0 %v1058
  %v1120 = vpop.f32.mrf.mxu0
  %v1121 = vadd.f32 0.0, %v1120
  %v1122 = vpop.f32.mrf.mxu0
  %1123 = vdwg.mxu0
  %v1124 = vadd.f32 %v158, %v1121
  %v1125 = vxor.u32 %v1124, 2147483648
  %v1126 = vmul.f32 %v1125, 1.442695
  %v1127 = vpow.pop %v1126
  %v1128 = vadd.f32 %v1127, 1.0
  %v1129 = vrcp.pop %v1128
  %v1130 = vmul.f32 %v1128, %v1129
  %v1131 = vsub.f32 1.0, %v1130
  %v1132 = vmul.f32 %v1129, %v1131
  %v1133 = vadd.f32 %v1129, %v1132
  %vm1134 = vweird.f32 %v1128
  %vm1135 = vweird.f32 %v1129
  %vm1136 = vmor %vm1134, %vm1135
  %v1137 = vsel %vm1136, %v1129, %v1133
  %v1138 = vand.u32 2147483647, %v1128
  %vm1139 = vcmp.eq.f32.partialorder %v1138, 8.507059e+37
  %v1140 = vand.u32 %v1128, 2147483648
  %v1141 = vor.u32 1.1754944e-38, %v1140
  %v1142 = vsel %vm1139, %v1141, %v1137
  %v1143 = vmul.f32 1.0, %v1142
  %v1144 = vtanh.pop %v1124
  %v1145 = vmul.f32 %v1143, %v1026
  %1147 = vrot.lane.b32.xlu0 %v1144, 32
  %v1148 = vpop.permute.xlu0 %1147
  %v1150 = vmul.f32 %v1143, %v1148
  %1152 = vrot.lane.b32.xlu0 %v1150, 32
  %v1153 = vpop.permute.xlu0 %1152
  %v1155 = vadd.f32 %v1145, %v1153
  %v1156 = vtanh.pop %v1155
  %1158 = vrot.lane.b32.xlu0 %v1156, 32
  %v1159 = vpop.permute.xlu0 %1158
  %v1161 = vmul.f32 %v1143, %v1159
  %v1162 = vpack.c.bf16 %v1161, %v1161
  %v1163 = vpack.c.bf16 %v1110, %v1110
  %1165 = vrot.lane.b32.xlu0 %v1163, 64
  %v1166 = vpop.permute.xlu0 %1165
  %v1168 = vsel %vm94, %v1166, 0
  %1170 = vmatpush.bf16.msra.mxu0 0
  %1171 = vmatpush.bf16.msra.mxu0 0
  %1172 = vmatpush.bf16.msra.mxu0 0
  %1173 = vmatpush.bf16.msra.mxu0 0
  %1174 = vmatpush.bf16.msra.mxu0 0
  %1175 = vmatpush.bf16.msra.mxu0 0
  %1176 = vmatpush.bf16.msra.mxu0 %v252
  %1177 = vmatpush.bf16.msra.mxu0 %v251
  %1178 = vmatmul.bf16.gmra.mxu0 %v1168
  %v1179 = vpop.f32.mrf.mxu0
  %v1180 = vadd.f32 0.0, %v1179
  %v1181 = vpop.f32.mrf.mxu0
  %1182 = vdwg.mxu0
  %1184 = vrot.lane.b32.xlu0 %v1162, 64
  %v1185 = vpop.permute.xlu0 %1184
  %v1187 = vsel %vm94, %v1185, 0
  %1189 = vmatpush.bf16.msra.mxu0 0
  %1190 = vmatpush.bf16.msra.mxu0 0
  %1191 = vmatpush.bf16.msra.mxu0 0
  %1192 = vmatpush.bf16.msra.mxu0 0
  %1193 = vmatpush.bf16.msra.mxu0 0
  %1194 = vmatpush.bf16.msra.mxu0 0
  %1195 = vmatpush.bf16.msra.mxu0 %v280
  %1196 = vmatpush.bf16.msra.mxu0 %v279
  %1197 = vmatmul.bf16.gmra.mxu0 %v1187
  %v1198 = vpop.f32.mrf.mxu0
  %v1199 = vadd.f32 %v1180, %v1198
  %v1200 = vpop.f32.mrf.mxu0
  %1201 = vdwg.mxu0
  %v1202 = vadd.f32 %v1199, %v174
  %v1203 = vxor.u32 %v1202, 2147483648
  %v1204 = vmul.f32 %v1203, 1.442695
  %v1205 = vpow.pop %v1204
  %v1206 = vadd.f32 %v1205, 1.0
  %v1207 = vrcp.pop %v1206
  %v1208 = vmul.f32 %v1206, %v1207
  %v1209 = vsub.f32 1.0, %v1208
  %v1210 = vmul.f32 %v1207, %v1209
  %v1211 = vadd.f32 %v1207, %v1210
  %vm1212 = vweird.f32 %v1206
  %vm1213 = vweird.f32 %v1207
  %vm1214 = vmor %vm1212, %vm1213
  %v1215 = vsel %vm1214, %v1207, %v1211
  %v1216 = vand.u32 2147483647, %v1206
  %vm1217 = vcmp.eq.f32.partialorder %v1216, 8.507059e+37
  %v1218 = vand.u32 %v1206, 2147483648
  %v1219 = vor.u32 1.1754944e-38, %v1218
  %v1220 = vsel %vm1217, %v1219, %v1215
  %v1221 = vmul.f32 1.0, %v1220
  %v1222 = vtanh.pop %v1202
  %v1223 = vmul.f32 %v1221, %v1104
  %1225 = vrot.lane.b32.xlu0 %v1222, 32
  %v1226 = vpop.permute.xlu0 %1225
  %v1228 = vmul.f32 %v1221, %v1226
  %1230 = vrot.lane.b32.xlu0 %v1228, 32
  %v1231 = vpop.permute.xlu0 %1230
  %v1233 = vadd.f32 %v1223, %v1231
  %v1234 = vtanh.pop %v1233
  %1236 = vrot.lane.b32.xlu0 %v1234, 32
  %v1237 = vpop.permute.xlu0 %1236
  %v1239 = vmul.f32 %v1221, %v1237
  %v1240 = vld [vmem:[%s6] sm:$0x1]
  %v1241 = vld [vmem:[#allocation2] sm:$0x1]
  %1243 = vset.pattern.permute.xlu0 0
  %1244 = vperm.xlu0 %1243, %v1241
  %v1245 = vpop.permute.xlu0 %1244
  %v1247 = vperm.slane %v1245, 0
  %1249 = vrot.lane.b32.xlu0 %v1239, 64
  %v1250 = vpop.permute.xlu0 %1249
  %v1252 = vsel %vm94, %v1240, 0
  %v1254 = vsel %vm94, %v1250, 0
  %1256 = vmatpush.xpose.msra.mxu0 0.0
  %1257 = vmatpush.xpose.msra.mxu0 0.0
  %1258 = vmatpush.xpose.msra.mxu0 0.0
  %1259 = vmatpush.xpose.msra.mxu0 0.0
  %1260 = vmatpush.xpose.msra.mxu0 0.0
  %1261 = vmatpush.xpose.msra.mxu0 0.0
  %1262 = vmatpush.xpose.msra.mxu0 0.0
  %1263 = vmatpush.xpose.msra.mxu0 0.0
  %1264 = vmatpush.xpose.msra.mxu0 0.0
  %1265 = vmatpush.xpose.msra.mxu0 0.0
  %1266 = vmatpush.xpose.msra.mxu0 0.0
  %1267 = vmatpush.xpose.msra.mxu0 0.0
  %1268 = vmatpush.xpose.msra.mxu0 0.0
  %1269 = vmatpush.xpose.msra.mxu0 0.0
  %1270 = vmatpush.xpose.msra.mxu0 0.0
  %1271 = vmatpush.xpose.msra.mxu0 %v1254
  %1272 = vmatmul.f32.gmra.mxu0 %v1252
  %v1273 = vpop.f32.mrf.mxu0
  %v1274 = vadd.f32 %v1247, %v1273
  %1275 = vdwg.mxu0
  %v1276 = vxor.u32 %v1274, 2147483648
  %v1277 = vmul.f32 %v1276, 1.442695
  %v1278 = vpow.pop %v1277
  %v1279 = vadd.f32 %v1278, 1.0
  %v1280 = vrcp.pop %v1279
  %v1281 = vmul.f32 %v1279, %v1280
  %v1282 = vsub.f32 1.0, %v1281
  %v1283 = vmul.f32 %v1280, %v1282
  %v1284 = vadd.f32 %v1280, %v1283
  %vm1285 = vweird.f32 %v1279
  %vm1286 = vweird.f32 %v1280
  %vm1287 = vmor %vm1285, %vm1286
  %v1288 = vsel %vm1287, %v1280, %v1284
  %v1289 = vand.u32 2147483647, %v1279
  %vm1290 = vcmp.eq.f32.partialorder %v1289, 8.507059e+37
  %v1291 = vand.u32 %v1279, 2147483648
  %v1292 = vor.u32 1.1754944e-38, %v1291
  %v1293 = vsel %vm1290, %v1292, %v1288
  %v1294 = vmul.f32 1.0, %v1293
  %vm1295 = vcmask 57344
  %1296 = vst.msk [vmem:[%s8] sm:$0x1] %vm1295, %v1294
  // Predicated region
  $region34: #{password_rnn_forward.1} parent=0 // pred_check
    _
  $region35: #{password_rnn_forward.1} parent=0 // pred_check_branch
    %1298 = sbr.rel (0) target = $region37
  $region36: #{password_rnn_forward.1} parent=0 // pred_region
    _
  $region37: #{password_rnn_forward.1} parent=0 // pred_fallthru
    _
  // Predicated region
  $region38: #{password_rnn_forward.1} parent=0 // pred_check
    _
  $region39: #{password_rnn_forward.1} parent=0 // pred_check_branch
    %1300 = sbr.rel (0) target = $region41
  $region40: #{password_rnn_forward.1} parent=0 // pred_region
    _
  $region41: #{password_rnn_forward.1} parent=0 // pred_fallthru
    _

</llo_original>
